<compile_context>
chip_gen: v7x
topology: tpu7x:2x2x1
jax: 0.10.0
libtpu: 0.0.40
codegen_flags: <defaults>
</compile_context>

<pallas_src>
import functools
import math

import jax
import jax.numpy as jnp
from jax.experimental import pallas as pl
from jax.experimental.pallas import tpu as pltpu

GATE = 128  # lane-padded width of each GRU gate block (r | z | n)


def e2ernn_kernel(emb_ref,                      # (T*Bp, E)  bf16, time-major
                  wihf_ref, whhf_ref,           # (E, 3G), (G, 3G)  bf16
                  bxf_ref, bhnf_ref,            # (1, 3G), (1, G)   f32
                  wihb_ref, bxb_ref, bhnb_ref,  # backward direction
                  w1a_ref, w1b_ref, b1_ref,     # fc1 split over fwd/bwd halves
                  w2_ref, b2_ref, w3_ref, b3_ref,
                  m1_ref, m2_ref,               # dropout masks, values in {0, 2}
                  out_ref):                     # (Bp, 128) f32
    G = GATE
    TB = emb_ref.shape[0]
    Bp = out_ref.shape[0]
    T = TB // Bp
    f32 = jnp.float32
    bf16 = jnp.bfloat16

    emb = emb_ref[...]                          # (T*Bp, E) bf16

    # ---------------- forward GRU -----------------------------------------
    # Hoisted input projection: one large MXU matmul for all T steps instead
    # of T tiny matmuls on the serial recurrence path.  bxf already folds
    # b_ih + b_hh for the r and z gates (b_hn must stay inside the r* term).
    gx_all = (jnp.dot(emb, wihf_ref[...], preferred_element_type=f32)
              + bxf_ref[...])                   # (T*Bp, 3G) f32

    whh_f = whhf_ref[...]                                    # (G, 3G) bf16
    bhn_f = jnp.broadcast_to(bhnf_ref[...], (Bp, G))         # hoisted broadcast

    h = jnp.zeros((Bp, G), f32)
    # Fully unrolled (static T): static vreg-aligned slices; the LLO scheduler
    # can overlap the h @ W_hh MXU work with the previous step's VPU gate math.
    for t in range(T):
        gx = gx_all[t * Bp:(t + 1) * Bp, :]                  # (Bp, 3G)
        gh = jnp.dot(h.astype(bf16), whh_f, preferred_element_type=f32)
        r = jax.nn.sigmoid(gx[:, 0:G] + gh[:, 0:G])
        z = jax.nn.sigmoid(gx[:, G:2 * G] + gh[:, G:2 * G])
        n = jnp.tanh(gx[:, 2 * G:3 * G] + r * (gh[:, 2 * G:3 * G] + bhn_f))
        h = (1.0 - z) * n + z * h
    h_fwd = h                                                # (Bp, G) f32

    # ---------------- backward GRU, last output position only --------------
    # bigru_out[:, -1, H:] is one backward-cell step on the final token from
    # h0 = 0, so the h @ W_hh term is exactly zero and only the hidden biases
    # survive (b_hr/b_hz are folded into bxb, b_hn enters via r_b * b_hn).
    x_last = emb[(T - 1) * Bp:T * Bp, :]
    gxb = (jnp.dot(x_last, wihb_ref[...], preferred_element_type=f32)
           + bxb_ref[...])
    r_b = jax.nn.sigmoid(gxb[:, 0:G])
    z_b = jax.nn.sigmoid(gxb[:, G:2 * G])
    n_b = jnp.tanh(gxb[:, 2 * G:3 * G]
                   + r_b * jnp.broadcast_to(bhnb_ref[...], (Bp, G)))
    h_bwd = (1.0 - z_b) * n_b

    # ---------------- MLP head ---------------------------------------------
    # fc1 over concat(h_fwd, h_bwd) without a cross-lane concat: w1 is split.
    h1 = (jnp.dot(h_fwd.astype(bf16), w1a_ref[...], preferred_element_type=f32)
          + jnp.dot(h_bwd.astype(bf16), w1b_ref[...], preferred_element_type=f32)
          + b1_ref[...])
    h1 = jnp.maximum(h1, 0.0) * m1_ref[...]     # relu + inverted dropout (p=0.5)

    h2 = (jnp.dot(h1.astype(bf16), w2_ref[...], preferred_element_type=f32)
          + b2_ref[...])
    h2 = jnp.maximum(h2, 0.0) * m2_ref[...]

    out_ref[...] = (jnp.dot(h2.astype(bf16), w3_ref[...],
                            preferred_element_type=f32) + b3_ref[...])


def init_params(key, vocab_size, embedding_dim, hidden_size):
    """Module-shaped parameters (GRU weights already transposed to (in, 3H))."""
    E, H = embedding_dim, hidden_size
    ks = jax.random.split(key, 15)
    s_rnn = 1.0 / math.sqrt(H)
    s_fc1 = 1.0 / math.sqrt(2 * H)
    s_fc2 = 1.0 / math.sqrt(256)
    s_fc3 = 1.0 / math.sqrt(128)

    def u(k, shape, s):
        return jax.random.uniform(k, shape, jnp.float32, -s, s)

    emb_w = jax.random.normal(ks[0], (vocab_size, E), jnp.float32)
    emb_w = emb_w.at[0].set(0.0)  # padding_idx=0

    return dict(
        emb=emb_w,
        # GRU weights pre-transposed to (in, 3H); PyTorch gate order [r|z|n].
        wih_f=u(ks[1], (E, 3 * H), s_rnn),
        whh_f=u(ks[2], (H, 3 * H), s_rnn),
        bih_f=u(ks[3], (1, 3 * H), s_rnn),
        bhh_f=u(ks[4], (1, 3 * H), s_rnn),
        wih_b=u(ks[5], (E, 3 * H), s_rnn),
        whh_b=u(ks[6], (H, 3 * H), s_rnn),  # unused: bwd dir takes one step from h0=0
        bih_b=u(ks[7], (1, 3 * H), s_rnn),
        bhh_b=u(ks[8], (1, 3 * H), s_rnn),
        # MLP head, (in, out) layout with (1, out) biases.
        w1=u(ks[9], (2 * H, 256), s_fc1),
        b1=u(ks[10], (1, 256), s_fc1),
        w2=u(ks[11], (256, 128), s_fc2),
        b2=u(ks[12], (1, 128), s_fc2),
        w3=u(ks[13], (128, 2), s_fc3),
        b3=u(ks[14], (1, 2), s_fc3),
    )


def pack_params(p, hidden_size):
    """Repack module-shaped params into the lane-aligned bf16 kernel layout."""
    H, G = hidden_size, GATE
    assert H <= G
    bf16 = jnp.bfloat16

    def pad_gate_cols(w):                       # (rows, 3H) -> (rows, 3G)
        parts = [jnp.pad(w[:, g * H:(g + 1) * H], ((0, 0), (0, G - H)))
                 for g in range(3)]
        return jnp.concatenate(parts, axis=1)

    def pad_rows(w):                            # (H, n) -> (G, n)
        return jnp.pad(w, ((0, G - H), (0, 0)))

    def pad_cols(b, n_to):                      # (1, n) -> (1, n_to)
        return jnp.pad(b, ((0, 0), (0, n_to - b.shape[1])))

    def fold_bias(bih, bhh):                    # fold b_hh into r,z; keep b_in for n
        br = bih[:, 0:H] + bhh[:, 0:H]
        bz = bih[:, H:2 * H] + bhh[:, H:2 * H]
        bn = bih[:, 2 * H:3 * H]
        return pad_gate_cols(jnp.concatenate([br, bz, bn], axis=1))

    return dict(
        emb=p["emb"],
        wih_f=pad_gate_cols(p["wih_f"]).astype(bf16),
        whh_f=pad_rows(pad_gate_cols(p["whh_f"])).astype(bf16),
        bx_f=fold_bias(p["bih_f"], p["bhh_f"]),
        bhn_f=pad_cols(p["bhh_f"][:, 2 * H:3 * H], G),
        wih_b=pad_gate_cols(p["wih_b"]).astype(bf16),
        bx_b=fold_bias(p["bih_b"], p["bhh_b"]),
        bhn_b=pad_cols(p["bhh_b"][:, 2 * H:3 * H], G),
        w1a=pad_rows(p["w1"][:H, :]).astype(bf16),
        w1b=pad_rows(p["w1"][H:, :]).astype(bf16),
        b1=p["b1"],
        w2=p["w2"].astype(bf16),
        b2=p["b2"],
        w3=jnp.pad(p["w3"], ((0, 0), (0, G - p["w3"].shape[1]))).astype(bf16),
        b3=pad_cols(p["b3"], G),
    )


@jax.jit
def e2ernn_forward(sentence, kparams, key):
    B, T = sentence.shape
    E = kparams["emb"].shape[1]
    Bp = max(8, ((B + 7) // 8) * 8)             # pad batch to a sublane multiple

    # Time-major embedding gather directly (no gather-then-transpose).
    emb = kparams["emb"][sentence.T]                        # (T, B, E) f32
    emb = jnp.pad(emb, ((0, 0), (0, Bp - B), (0, 0)))       # (T, Bp, E)
    emb = emb.reshape(T * Bp, E).astype(jnp.bfloat16)       # (T*Bp, E)

    # F.dropout(p=0.5, training=True): inverted-dropout masks with values {0, 2}.
    k1, k2 = jax.random.split(key)
    m1 = jnp.where(jax.random.bernoulli(k1, 0.5, (Bp, 256)), 2.0, 0.0).astype(jnp.float32)
    m2 = jnp.where(jax.random.bernoulli(k2, 0.5, (Bp, 128)), 2.0, 0.0).astype(jnp.float32)

    vmem = pl.BlockSpec(memory_space=pltpu.MemorySpace.VMEM)
    args = (emb,
            kparams["wih_f"], kparams["whh_f"], kparams["bx_f"], kparams["bhn_f"],
            kparams["wih_b"], kparams["bx_b"], kparams["bhn_b"],
            kparams["w1a"], kparams["w1b"], kparams["b1"],
            kparams["w2"], kparams["b2"], kparams["w3"], kparams["b3"],
            m1, m2)

    out = pl.pallas_call(
        e2ernn_kernel,
        out_shape=jax.ShapeDtypeStruct((Bp, GATE), jnp.float32),
        in_specs=[vmem] * len(args),
        out_specs=vmem,
    )(*args)
    return out[:B, :2]


if __name__ == "__main__":
    VOCAB_SIZE = 50
    EMBED_DIM = 32
    HIDDEN = 32
    BATCH, SEQ = 2, 8

    key = jax.random.PRNGKey(0)
    k_params, k_data, k_drop = jax.random.split(key, 3)

    params = init_params(k_params, VOCAB_SIZE, EMBED_DIM, HIDDEN)
    kparams = pack_params(params, HIDDEN)
    sentence = jax.random.randint(k_data, (BATCH, SEQ), 0, VOCAB_SIZE,
                                  dtype=jnp.int32)

    out = e2ernn_forward(sentence, kparams, k_drop)
    out = jax.block_until_ready(out)

    assert out.shape == (BATCH, 2), out.shape
    assert bool(jnp.all(jnp.isfinite(out)))
    print("KERNEL_OK")
</pallas_src>

<mosaic_0001>
module attributes {stable_mosaic.version = 11 : i64} {
  func.func @e2ernn_kernel(%arg0: memref<64x32xbf16, #tpu.memory_space<vmem>>, %arg1: memref<32x384xbf16, #tpu.memory_space<vmem>>, %arg2: memref<128x384xbf16, #tpu.memory_space<vmem>>, %arg3: memref<1x384xf32, #tpu.memory_space<vmem>>, %arg4: memref<1x128xf32, #tpu.memory_space<vmem>>, %arg5: memref<32x384xbf16, #tpu.memory_space<vmem>>, %arg6: memref<1x384xf32, #tpu.memory_space<vmem>>, %arg7: memref<1x128xf32, #tpu.memory_space<vmem>>, %arg8: memref<128x256xbf16, #tpu.memory_space<vmem>>, %arg9: memref<128x256xbf16, #tpu.memory_space<vmem>>, %arg10: memref<1x256xf32, #tpu.memory_space<vmem>>, %arg11: memref<256x128xbf16, #tpu.memory_space<vmem>>, %arg12: memref<1x128xf32, #tpu.memory_space<vmem>>, %arg13: memref<128x128xbf16, #tpu.memory_space<vmem>>, %arg14: memref<1x128xf32, #tpu.memory_space<vmem>>, %arg15: memref<8x256xf32, #tpu.memory_space<vmem>>, %arg16: memref<8x128xf32, #tpu.memory_space<vmem>>, %arg17: memref<8x128xf32, #tpu.memory_space<vmem>>) attributes {dimension_semantics = [], scalar_prefetch = 0 : i64, scratch_operands = 0 : i64, tpu.core_type = #tpu.core_type<tc>} {
    %c0 = arith.constant 0 : index
    %c0_0 = arith.constant 0 : index
    %0 = vector.load %arg0[%c0, %c0_0] : memref<64x32xbf16, #tpu.memory_space<vmem>>, vector<64x32xbf16>
    %c0_1 = arith.constant 0 : index
    %c0_2 = arith.constant 0 : index
    %1 = vector.load %arg1[%c0_1, %c0_2] : memref<32x384xbf16, #tpu.memory_space<vmem>>, vector<32x384xbf16>
    %cst = arith.constant dense<0.000000e+00> : vector<64x384xf32>
    %2 = tpu.matmul %0, %1, %cst {dimension_numbers = #tpu.dot_dimension_numbers<[1], [0], [0], [1], [0, 0, 1, 1], [], []>} : vector<64x32xbf16>, vector<32x384xbf16>, vector<64x384xf32> -> vector<64x384xf32>
    %c0_3 = arith.constant 0 : index
    %c0_4 = arith.constant 0 : index
    %3 = vector.load %arg3[%c0_3, %c0_4] : memref<1x384xf32, #tpu.memory_space<vmem>>, vector<1x384xf32>
    %4 = vector.broadcast %3 : vector<1x384xf32> to vector<64x384xf32>
    %5 = arith.addf %2, %4 : vector<64x384xf32>
    %c0_5 = arith.constant 0 : index
    %c0_6 = arith.constant 0 : index
    %6 = vector.load %arg2[%c0_5, %c0_6] : memref<128x384xbf16, #tpu.memory_space<vmem>>, vector<128x384xbf16>
    %c0_7 = arith.constant 0 : index
    %c0_8 = arith.constant 0 : index
    %7 = vector.load %arg4[%c0_7, %c0_8] : memref<1x128xf32, #tpu.memory_space<vmem>>, vector<1x128xf32>
    %8 = vector.shape_cast %7 : vector<1x128xf32> to vector<1x128xf32>
    %9 = vector.broadcast %8 : vector<1x128xf32> to vector<8x128xf32>
    %cst_9 = arith.constant 0.000000e+00 : f32
    %10 = vector.broadcast %cst_9 : f32 to vector<8x128xf32>
    %11 = vector.extract_strided_slice %5 {offsets = [0, 0], sizes = [8, 384], strides = [1, 1]} : vector<64x384xf32> to vector<8x384xf32>
    %12 = arith.truncf %10 : vector<8x128xf32> to vector<8x128xbf16>
    %cst_10 = arith.constant dense<0.000000e+00> : vector<8x384xf32>
    %13 = tpu.matmul %12, %6, %cst_10 {dimension_numbers = #tpu.dot_dimension_numbers<[1], [0], [0], [1], [0, 0, 1, 1], [], []>} : vector<8x128xbf16>, vector<128x384xbf16>, vector<8x384xf32> -> vector<8x384xf32>
    %14 = vector.extract_strided_slice %11 {offsets = [0, 0], sizes = [8, 128], strides = [1, 1]} : vector<8x384xf32> to vector<8x128xf32>
    %15 = vector.extract_strided_slice %13 {offsets = [0, 0], sizes = [8, 128], strides = [1, 1]} : vector<8x384xf32> to vector<8x128xf32>
    %16 = arith.addf %14, %15 : vector<8x128xf32>
    %17 = arith.negf %16 : vector<8x128xf32>
    %18 = math.exp %17 : vector<8x128xf32>
    %cst_11 = arith.constant 1.000000e+00 : f32
    %19 = vector.broadcast %cst_11 : f32 to vector<8x128xf32>
    %20 = arith.addf %19, %18 : vector<8x128xf32>
    %21 = arith.divf %19, %20 : vector<8x128xf32>
    %22 = vector.extract_strided_slice %11 {offsets = [0, 128], sizes = [8, 128], strides = [1, 1]} : vector<8x384xf32> to vector<8x128xf32>
    %23 = vector.extract_strided_slice %13 {offsets = [0, 128], sizes = [8, 128], strides = [1, 1]} : vector<8x384xf32> to vector<8x128xf32>
    %24 = arith.addf %22, %23 : vector<8x128xf32>
    %25 = arith.negf %24 : vector<8x128xf32>
    %26 = math.exp %25 : vector<8x128xf32>
    %cst_12 = arith.constant 1.000000e+00 : f32
    %27 = vector.broadcast %cst_12 : f32 to vector<8x128xf32>
    %28 = arith.addf %27, %26 : vector<8x128xf32>
    %29 = arith.divf %27, %28 : vector<8x128xf32>
    %30 = vector.extract_strided_slice %11 {offsets = [0, 256], sizes = [8, 128], strides = [1, 1]} : vector<8x384xf32> to vector<8x128xf32>
    %31 = vector.extract_strided_slice %13 {offsets = [0, 256], sizes = [8, 128], strides = [1, 1]} : vector<8x384xf32> to vector<8x128xf32>
    %32 = arith.addf %31, %9 : vector<8x128xf32>
    %33 = arith.mulf %21, %32 : vector<8x128xf32>
    %34 = arith.addf %30, %33 : vector<8x128xf32>
    %35 = math.tanh %34 : vector<8x128xf32>
    %cst_13 = arith.constant 1.000000e+00 : f32
    %36 = vector.broadcast %cst_13 : f32 to vector<8x128xf32>
    %37 = arith.subf %36, %29 : vector<8x128xf32>
    %38 = arith.mulf %37, %35 : vector<8x128xf32>
    %39 = arith.mulf %29, %10 : vector<8x128xf32>
    %40 = arith.addf %38, %39 : vector<8x128xf32>
    %41 = vector.extract_strided_slice %5 {offsets = [8, 0], sizes = [8, 384], strides = [1, 1]} : vector<64x384xf32> to vector<8x384xf32>
    %42 = arith.truncf %40 : vector<8x128xf32> to vector<8x128xbf16>
    %cst_14 = arith.constant dense<0.000000e+00> : vector<8x384xf32>
    %43 = tpu.matmul %42, %6, %cst_14 {dimension_numbers = #tpu.dot_dimension_numbers<[1], [0], [0], [1], [0, 0, 1, 1], [], []>} : vector<8x128xbf16>, vector<128x384xbf16>, vector<8x384xf32> -> vector<8x384xf32>
    %44 = vector.extract_strided_slice %41 {offsets = [0, 0], sizes = [8, 128], strides = [1, 1]} : vector<8x384xf32> to vector<8x128xf32>
    %45 = vector.extract_strided_slice %43 {offsets = [0, 0], sizes = [8, 128], strides = [1, 1]} : vector<8x384xf32> to vector<8x128xf32>
    %46 = arith.addf %44, %45 : vector<8x128xf32>
    %47 = arith.negf %46 : vector<8x128xf32>
    %48 = math.exp %47 : vector<8x128xf32>
    %cst_15 = arith.constant 1.000000e+00 : f32
    %49 = vector.broadcast %cst_15 : f32 to vector<8x128xf32>
    %50 = arith.addf %49, %48 : vector<8x128xf32>
    %51 = arith.divf %49, %50 : vector<8x128xf32>
    %52 = vector.extract_strided_slice %41 {offsets = [0, 128], sizes = [8, 128], strides = [1, 1]} : vector<8x384xf32> to vector<8x128xf32>
    %53 = vector.extract_strided_slice %43 {offsets = [0, 128], sizes = [8, 128], strides = [1, 1]} : vector<8x384xf32> to vector<8x128xf32>
    %54 = arith.addf %52, %53 : vector<8x128xf32>
    %55 = arith.negf %54 : vector<8x128xf32>
    %56 = math.exp %55 : vector<8x128xf32>
    %cst_16 = arith.constant 1.000000e+00 : f32
    %57 = vector.broadcast %cst_16 : f32 to vector<8x128xf32>
    %58 = arith.addf %57, %56 : vector<8x128xf32>
    %59 = arith.divf %57, %58 : vector<8x128xf32>
    %60 = vector.extract_strided_slice %41 {offsets = [0, 256], sizes = [8, 128], strides = [1, 1]} : vector<8x384xf32> to vector<8x128xf32>
    %61 = vector.extract_strided_slice %43 {offsets = [0, 256], sizes = [8, 128], strides = [1, 1]} : vector<8x384xf32> to vector<8x128xf32>
    %62 = arith.addf %61, %9 : vector<8x128xf32>
    %63 = arith.mulf %51, %62 : vector<8x128xf32>
    %64 = arith.addf %60, %63 : vector<8x128xf32>
    %65 = math.tanh %64 : vector<8x128xf32>
    %cst_17 = arith.constant 1.000000e+00 : f32
    %66 = vector.broadcast %cst_17 : f32 to vector<8x128xf32>
    %67 = arith.subf %66, %59 : vector<8x128xf32>
    %68 = arith.mulf %67, %65 : vector<8x128xf32>
    %69 = arith.mulf %59, %40 : vector<8x128xf32>
    %70 = arith.addf %68, %69 : vector<8x128xf32>
    %71 = vector.extract_strided_slice %5 {offsets = [16, 0], sizes = [8, 384], strides = [1, 1]} : vector<64x384xf32> to vector<8x384xf32>
    %72 = arith.truncf %70 : vector<8x128xf32> to vector<8x128xbf16>
    %cst_18 = arith.constant dense<0.000000e+00> : vector<8x384xf32>
    %73 = tpu.matmul %72, %6, %cst_18 {dimension_numbers = #tpu.dot_dimension_numbers<[1], [0], [0], [1], [0, 0, 1, 1], [], []>} : vector<8x128xbf16>, vector<128x384xbf16>, vector<8x384xf32> -> vector<8x384xf32>
    %74 = vector.extract_strided_slice %71 {offsets = [0, 0], sizes = [8, 128], strides = [1, 1]} : vector<8x384xf32> to vector<8x128xf32>
    %75 = vector.extract_strided_slice %73 {offsets = [0, 0], sizes = [8, 128], strides = [1, 1]} : vector<8x384xf32> to vector<8x128xf32>
    %76 = arith.addf %74, %75 : vector<8x128xf32>
    %77 = arith.negf %76 : vector<8x128xf32>
    %78 = math.exp %77 : vector<8x128xf32>
    %cst_19 = arith.constant 1.000000e+00 : f32
    %79 = vector.broadcast %cst_19 : f32 to vector<8x128xf32>
    %80 = arith.addf %79, %78 : vector<8x128xf32>
    %81 = arith.divf %79, %80 : vector<8x128xf32>
    %82 = vector.extract_strided_slice %71 {offsets = [0, 128], sizes = [8, 128], strides = [1, 1]} : vector<8x384xf32> to vector<8x128xf32>
    %83 = vector.extract_strided_slice %73 {offsets = [0, 128], sizes = [8, 128], strides = [1, 1]} : vector<8x384xf32> to vector<8x128xf32>
    %84 = arith.addf %82, %83 : vector<8x128xf32>
    %85 = arith.negf %84 : vector<8x128xf32>
    %86 = math.exp %85 : vector<8x128xf32>
    %cst_20 = arith.constant 1.000000e+00 : f32
    %87 = vector.broadcast %cst_20 : f32 to vector<8x128xf32>
    %88 = arith.addf %87, %86 : vector<8x128xf32>
    %89 = arith.divf %87, %88 : vector<8x128xf32>
    %90 = vector.extract_strided_slice %71 {offsets = [0, 256], sizes = [8, 128], strides = [1, 1]} : vector<8x384xf32> to vector<8x128xf32>
    %91 = vector.extract_strided_slice %73 {offsets = [0, 256], sizes = [8, 128], strides = [1, 1]} : vector<8x384xf32> to vector<8x128xf32>
    %92 = arith.addf %91, %9 : vector<8x128xf32>
    %93 = arith.mulf %81, %92 : vector<8x128xf32>
    %94 = arith.addf %90, %93 : vector<8x128xf32>
    %95 = math.tanh %94 : vector<8x128xf32>
    %cst_21 = arith.constant 1.000000e+00 : f32
    %96 = vector.broadcast %cst_21 : f32 to vector<8x128xf32>
    %97 = arith.subf %96, %89 : vector<8x128xf32>
    %98 = arith.mulf %97, %95 : vector<8x128xf32>
    %99 = arith.mulf %89, %70 : vector<8x128xf32>
    %100 = arith.addf %98, %99 : vector<8x128xf32>
    %101 = vector.extract_strided_slice %5 {offsets = [24, 0], sizes = [8, 384], strides = [1, 1]} : vector<64x384xf32> to vector<8x384xf32>
    %102 = arith.truncf %100 : vector<8x128xf32> to vector<8x128xbf16>
    %cst_22 = arith.constant dense<0.000000e+00> : vector<8x384xf32>
    %103 = tpu.matmul %102, %6, %cst_22 {dimension_numbers = #tpu.dot_dimension_numbers<[1], [0], [0], [1], [0, 0, 1, 1], [], []>} : vector<8x128xbf16>, vector<128x384xbf16>, vector<8x384xf32> -> vector<8x384xf32>
    %104 = vector.extract_strided_slice %101 {offsets = [0, 0], sizes = [8, 128], strides = [1, 1]} : vector<8x384xf32> to vector<8x128xf32>
    %105 = vector.extract_strided_slice %103 {offsets = [0, 0], sizes = [8, 128], strides = [1, 1]} : vector<8x384xf32> to vector<8x128xf32>
    %106 = arith.addf %104, %105 : vector<8x128xf32>
    %107 = arith.negf %106 : vector<8x128xf32>
    %108 = math.exp %107 : vector<8x128xf32>
    %cst_23 = arith.constant 1.000000e+00 : f32
    %109 = vector.broadcast %cst_23 : f32 to vector<8x128xf32>
    %110 = arith.addf %109, %108 : vector<8x128xf32>
    %111 = arith.divf %109, %110 : vector<8x128xf32>
    %112 = vector.extract_strided_slice %101 {offsets = [0, 128], sizes = [8, 128], strides = [1, 1]} : vector<8x384xf32> to vector<8x128xf32>
    %113 = vector.extract_strided_slice %103 {offsets = [0, 128], sizes = [8, 128], strides = [1, 1]} : vector<8x384xf32> to vector<8x128xf32>
    %114 = arith.addf %112, %113 : vector<8x128xf32>
    %115 = arith.negf %114 : vector<8x128xf32>
    %116 = math.exp %115 : vector<8x128xf32>
    %cst_24 = arith.constant 1.000000e+00 : f32
    %117 = vector.broadcast %cst_24 : f32 to vector<8x128xf32>
    %118 = arith.addf %117, %116 : vector<8x128xf32>
    %119 = arith.divf %117, %118 : vector<8x128xf32>
    %120 = vector.extract_strided_slice %101 {offsets = [0, 256], sizes = [8, 128], strides = [1, 1]} : vector<8x384xf32> to vector<8x128xf32>
    %121 = vector.extract_strided_slice %103 {offsets = [0, 256], sizes = [8, 128], strides = [1, 1]} : vector<8x384xf32> to vector<8x128xf32>
    %122 = arith.addf %121, %9 : vector<8x128xf32>
    %123 = arith.mulf %111, %122 : vector<8x128xf32>
    %124 = arith.addf %120, %123 : vector<8x128xf32>
    %125 = math.tanh %124 : vector<8x128xf32>
    %cst_25 = arith.constant 1.000000e+00 : f32
    %126 = vector.broadcast %cst_25 : f32 to vector<8x128xf32>
    %127 = arith.subf %126, %119 : vector<8x128xf32>
    %128 = arith.mulf %127, %125 : vector<8x128xf32>
    %129 = arith.mulf %119, %100 : vector<8x128xf32>
    %130 = arith.addf %128, %129 : vector<8x128xf32>
    %131 = vector.extract_strided_slice %5 {offsets = [32, 0], sizes = [8, 384], strides = [1, 1]} : vector<64x384xf32> to vector<8x384xf32>
    %132 = arith.truncf %130 : vector<8x128xf32> to vector<8x128xbf16>
    %cst_26 = arith.constant dense<0.000000e+00> : vector<8x384xf32>
    %133 = tpu.matmul %132, %6, %cst_26 {dimension_numbers = #tpu.dot_dimension_numbers<[1], [0], [0], [1], [0, 0, 1, 1], [], []>} : vector<8x128xbf16>, vector<128x384xbf16>, vector<8x384xf32> -> vector<8x384xf32>
    %134 = vector.extract_strided_slice %131 {offsets = [0, 0], sizes = [8, 128], strides = [1, 1]} : vector<8x384xf32> to vector<8x128xf32>
    %135 = vector.extract_strided_slice %133 {offsets = [0, 0], sizes = [8, 128], strides = [1, 1]} : vector<8x384xf32> to vector<8x128xf32>
    %136 = arith.addf %134, %135 : vector<8x128xf32>
    %137 = arith.negf %136 : vector<8x128xf32>
    %138 = math.exp %137 : vector<8x128xf32>
    %cst_27 = arith.constant 1.000000e+00 : f32
    %139 = vector.broadcast %cst_27 : f32 to vector<8x128xf32>
    %140 = arith.addf %139, %138 : vector<8x128xf32>
    %141 = arith.divf %139, %140 : vector<8x128xf32>
    %142 = vector.extract_strided_slice %131 {offsets = [0, 128], sizes = [8, 128], strides = [1, 1]} : vector<8x384xf32> to vector<8x128xf32>
    %143 = vector.extract_strided_slice %133 {offsets = [0, 128], sizes = [8, 128], strides = [1, 1]} : vector<8x384xf32> to vector<8x128xf32>
    %144 = arith.addf %142, %143 : vector<8x128xf32>
    %145 = arith.negf %144 : vector<8x128xf32>
    %146 = math.exp %145 : vector<8x128xf32>
    %cst_28 = arith.constant 1.000000e+00 : f32
    %147 = vector.broadcast %cst_28 : f32 to vector<8x128xf32>
    %148 = arith.addf %147, %146 : vector<8x128xf32>
    %149 = arith.divf %147, %148 : vector<8x128xf32>
    %150 = vector.extract_strided_slice %131 {offsets = [0, 256], sizes = [8, 128], strides = [1, 1]} : vector<8x384xf32> to vector<8x128xf32>
    %151 = vector.extract_strided_slice %133 {offsets = [0, 256], sizes = [8, 128], strides = [1, 1]} : vector<8x384xf32> to vector<8x128xf32>
    %152 = arith.addf %151, %9 : vector<8x128xf32>
    %153 = arith.mulf %141, %152 : vector<8x128xf32>
    %154 = arith.addf %150, %153 : vector<8x128xf32>
    %155 = math.tanh %154 : vector<8x128xf32>
    %cst_29 = arith.constant 1.000000e+00 : f32
    %156 = vector.broadcast %cst_29 : f32 to vector<8x128xf32>
    %157 = arith.subf %156, %149 : vector<8x128xf32>
    %158 = arith.mulf %157, %155 : vector<8x128xf32>
    %159 = arith.mulf %149, %130 : vector<8x128xf32>
    %160 = arith.addf %158, %159 : vector<8x128xf32>
    %161 = vector.extract_strided_slice %5 {offsets = [40, 0], sizes = [8, 384], strides = [1, 1]} : vector<64x384xf32> to vector<8x384xf32>
    %162 = arith.truncf %160 : vector<8x128xf32> to vector<8x128xbf16>
    %cst_30 = arith.constant dense<0.000000e+00> : vector<8x384xf32>
    %163 = tpu.matmul %162, %6, %cst_30 {dimension_numbers = #tpu.dot_dimension_numbers<[1], [0], [0], [1], [0, 0, 1, 1], [], []>} : vector<8x128xbf16>, vector<128x384xbf16>, vector<8x384xf32> -> vector<8x384xf32>
    %164 = vector.extract_strided_slice %161 {offsets = [0, 0], sizes = [8, 128], strides = [1, 1]} : vector<8x384xf32> to vector<8x128xf32>
    %165 = vector.extract_strided_slice %163 {offsets = [0, 0], sizes = [8, 128], strides = [1, 1]} : vector<8x384xf32> to vector<8x128xf32>
    %166 = arith.addf %164, %165 : vector<8x128xf32>
    %167 = arith.negf %166 : vector<8x128xf32>
    %168 = math.exp %167 : vector<8x128xf32>
    %cst_31 = arith.constant 1.000000e+00 : f32
    %169 = vector.broadcast %cst_31 : f32 to vector<8x128xf32>
    %170 = arith.addf %169, %168 : vector<8x128xf32>
    %171 = arith.divf %169, %170 : vector<8x128xf32>
    %172 = vector.extract_strided_slice %161 {offsets = [0, 128], sizes = [8, 128], strides = [1, 1]} : vector<8x384xf32> to vector<8x128xf32>
    %173 = vector.extract_strided_slice %163 {offsets = [0, 128], sizes = [8, 128], strides = [1, 1]} : vector<8x384xf32> to vector<8x128xf32>
    %174 = arith.addf %172, %173 : vector<8x128xf32>
    %175 = arith.negf %174 : vector<8x128xf32>
    %176 = math.exp %175 : vector<8x128xf32>
    %cst_32 = arith.constant 1.000000e+00 : f32
    %177 = vector.broadcast %cst_32 : f32 to vector<8x128xf32>
    %178 = arith.addf %177, %176 : vector<8x128xf32>
    %179 = arith.divf %177, %178 : vector<8x128xf32>
    %180 = vector.extract_strided_slice %161 {offsets = [0, 256], sizes = [8, 128], strides = [1, 1]} : vector<8x384xf32> to vector<8x128xf32>
    %181 = vector.extract_strided_slice %163 {offsets = [0, 256], sizes = [8, 128], strides = [1, 1]} : vector<8x384xf32> to vector<8x128xf32>
    %182 = arith.addf %181, %9 : vector<8x128xf32>
    %183 = arith.mulf %171, %182 : vector<8x128xf32>
    %184 = arith.addf %180, %183 : vector<8x128xf32>
    %185 = math.tanh %184 : vector<8x128xf32>
    %cst_33 = arith.constant 1.000000e+00 : f32
    %186 = vector.broadcast %cst_33 : f32 to vector<8x128xf32>
    %187 = arith.subf %186, %179 : vector<8x128xf32>
    %188 = arith.mulf %187, %185 : vector<8x128xf32>
    %189 = arith.mulf %179, %160 : vector<8x128xf32>
    %190 = arith.addf %188, %189 : vector<8x128xf32>
    %191 = vector.extract_strided_slice %5 {offsets = [48, 0], sizes = [8, 384], strides = [1, 1]} : vector<64x384xf32> to vector<8x384xf32>
    %192 = arith.truncf %190 : vector<8x128xf32> to vector<8x128xbf16>
    %cst_34 = arith.constant dense<0.000000e+00> : vector<8x384xf32>
    %193 = tpu.matmul %192, %6, %cst_34 {dimension_numbers = #tpu.dot_dimension_numbers<[1], [0], [0], [1], [0, 0, 1, 1], [], []>} : vector<8x128xbf16>, vector<128x384xbf16>, vector<8x384xf32> -> vector<8x384xf32>
    %194 = vector.extract_strided_slice %191 {offsets = [0, 0], sizes = [8, 128], strides = [1, 1]} : vector<8x384xf32> to vector<8x128xf32>
    %195 = vector.extract_strided_slice %193 {offsets = [0, 0], sizes = [8, 128], strides = [1, 1]} : vector<8x384xf32> to vector<8x128xf32>
    %196 = arith.addf %194, %195 : vector<8x128xf32>
    %197 = arith.negf %196 : vector<8x128xf32>
    %198 = math.exp %197 : vector<8x128xf32>
    %cst_35 = arith.constant 1.000000e+00 : f32
    %199 = vector.broadcast %cst_35 : f32 to vector<8x128xf32>
    %200 = arith.addf %199, %198 : vector<8x128xf32>
    %201 = arith.divf %199, %200 : vector<8x128xf32>
    %202 = vector.extract_strided_slice %191 {offsets = [0, 128], sizes = [8, 128], strides = [1, 1]} : vector<8x384xf32> to vector<8x128xf32>
    %203 = vector.extract_strided_slice %193 {offsets = [0, 128], sizes = [8, 128], strides = [1, 1]} : vector<8x384xf32> to vector<8x128xf32>
    %204 = arith.addf %202, %203 : vector<8x128xf32>
    %205 = arith.negf %204 : vector<8x128xf32>
    %206 = math.exp %205 : vector<8x128xf32>
    %cst_36 = arith.constant 1.000000e+00 : f32
    %207 = vector.broadcast %cst_36 : f32 to vector<8x128xf32>
    %208 = arith.addf %207, %206 : vector<8x128xf32>
    %209 = arith.divf %207, %208 : vector<8x128xf32>
    %210 = vector.extract_strided_slice %191 {offsets = [0, 256], sizes = [8, 128], strides = [1, 1]} : vector<8x384xf32> to vector<8x128xf32>
    %211 = vector.extract_strided_slice %193 {offsets = [0, 256], sizes = [8, 128], strides = [1, 1]} : vector<8x384xf32> to vector<8x128xf32>
    %212 = arith.addf %211, %9 : vector<8x128xf32>
    %213 = arith.mulf %201, %212 : vector<8x128xf32>
    %214 = arith.addf %210, %213 : vector<8x128xf32>
    %215 = math.tanh %214 : vector<8x128xf32>
    %cst_37 = arith.constant 1.000000e+00 : f32
    %216 = vector.broadcast %cst_37 : f32 to vector<8x128xf32>
    %217 = arith.subf %216, %209 : vector<8x128xf32>
    %218 = arith.mulf %217, %215 : vector<8x128xf32>
    %219 = arith.mulf %209, %190 : vector<8x128xf32>
    %220 = arith.addf %218, %219 : vector<8x128xf32>
    %221 = vector.extract_strided_slice %5 {offsets = [56, 0], sizes = [8, 384], strides = [1, 1]} : vector<64x384xf32> to vector<8x384xf32>
    %222 = arith.truncf %220 : vector<8x128xf32> to vector<8x128xbf16>
    %cst_38 = arith.constant dense<0.000000e+00> : vector<8x384xf32>
    %223 = tpu.matmul %222, %6, %cst_38 {dimension_numbers = #tpu.dot_dimension_numbers<[1], [0], [0], [1], [0, 0, 1, 1], [], []>} : vector<8x128xbf16>, vector<128x384xbf16>, vector<8x384xf32> -> vector<8x384xf32>
    %224 = vector.extract_strided_slice %221 {offsets = [0, 0], sizes = [8, 128], strides = [1, 1]} : vector<8x384xf32> to vector<8x128xf32>
    %225 = vector.extract_strided_slice %223 {offsets = [0, 0], sizes = [8, 128], strides = [1, 1]} : vector<8x384xf32> to vector<8x128xf32>
    %226 = arith.addf %224, %225 : vector<8x128xf32>
    %227 = arith.negf %226 : vector<8x128xf32>
    %228 = math.exp %227 : vector<8x128xf32>
    %cst_39 = arith.constant 1.000000e+00 : f32
    %229 = vector.broadcast %cst_39 : f32 to vector<8x128xf32>
    %230 = arith.addf %229, %228 : vector<8x128xf32>
    %231 = arith.divf %229, %230 : vector<8x128xf32>
    %232 = vector.extract_strided_slice %221 {offsets = [0, 128], sizes = [8, 128], strides = [1, 1]} : vector<8x384xf32> to vector<8x128xf32>
    %233 = vector.extract_strided_slice %223 {offsets = [0, 128], sizes = [8, 128], strides = [1, 1]} : vector<8x384xf32> to vector<8x128xf32>
    %234 = arith.addf %232, %233 : vector<8x128xf32>
    %235 = arith.negf %234 : vector<8x128xf32>
    %236 = math.exp %235 : vector<8x128xf32>
    %cst_40 = arith.constant 1.000000e+00 : f32
    %237 = vector.broadcast %cst_40 : f32 to vector<8x128xf32>
    %238 = arith.addf %237, %236 : vector<8x128xf32>
    %239 = arith.divf %237, %238 : vector<8x128xf32>
    %240 = vector.extract_strided_slice %221 {offsets = [0, 256], sizes = [8, 128], strides = [1, 1]} : vector<8x384xf32> to vector<8x128xf32>
    %241 = vector.extract_strided_slice %223 {offsets = [0, 256], sizes = [8, 128], strides = [1, 1]} : vector<8x384xf32> to vector<8x128xf32>
    %242 = arith.addf %241, %9 : vector<8x128xf32>
    %243 = arith.mulf %231, %242 : vector<8x128xf32>
    %244 = arith.addf %240, %243 : vector<8x128xf32>
    %245 = math.tanh %244 : vector<8x128xf32>
    %cst_41 = arith.constant 1.000000e+00 : f32
    %246 = vector.broadcast %cst_41 : f32 to vector<8x128xf32>
    %247 = arith.subf %246, %239 : vector<8x128xf32>
    %248 = arith.mulf %247, %245 : vector<8x128xf32>
    %249 = arith.mulf %239, %220 : vector<8x128xf32>
    %250 = arith.addf %248, %249 : vector<8x128xf32>
    %251 = vector.extract_strided_slice %0 {offsets = [56, 0], sizes = [8, 32], strides = [1, 1]} : vector<64x32xbf16> to vector<8x32xbf16>
    %c0_42 = arith.constant 0 : index
    %c0_43 = arith.constant 0 : index
    %252 = vector.load %arg5[%c0_42, %c0_43] : memref<32x384xbf16, #tpu.memory_space<vmem>>, vector<32x384xbf16>
    %cst_44 = arith.constant dense<0.000000e+00> : vector<8x384xf32>
    %253 = tpu.matmul %251, %252, %cst_44 {dimension_numbers = #tpu.dot_dimension_numbers<[1], [0], [0], [1], [0, 0, 1, 1], [], []>} : vector<8x32xbf16>, vector<32x384xbf16>, vector<8x384xf32> -> vector<8x384xf32>
    %c0_45 = arith.constant 0 : index
    %c0_46 = arith.constant 0 : index
    %254 = vector.load %arg6[%c0_45, %c0_46] : memref<1x384xf32, #tpu.memory_space<vmem>>, vector<1x384xf32>
    %255 = vector.broadcast %254 : vector<1x384xf32> to vector<8x384xf32>
    %256 = arith.addf %253, %255 : vector<8x384xf32>
    %257 = vector.extract_strided_slice %256 {offsets = [0, 0], sizes = [8, 128], strides = [1, 1]} : vector<8x384xf32> to vector<8x128xf32>
    %258 = arith.negf %257 : vector<8x128xf32>
    %259 = math.exp %258 : vector<8x128xf32>
    %cst_47 = arith.constant 1.000000e+00 : f32
    %260 = vector.broadcast %cst_47 : f32 to vector<8x128xf32>
    %261 = arith.addf %260, %259 : vector<8x128xf32>
    %262 = arith.divf %260, %261 : vector<8x128xf32>
    %263 = vector.extract_strided_slice %256 {offsets = [0, 128], sizes = [8, 128], strides = [1, 1]} : vector<8x384xf32> to vector<8x128xf32>
    %264 = arith.negf %263 : vector<8x128xf32>
    %265 = math.exp %264 : vector<8x128xf32>
    %cst_48 = arith.constant 1.000000e+00 : f32
    %266 = vector.broadcast %cst_48 : f32 to vector<8x128xf32>
    %267 = arith.addf %266, %265 : vector<8x128xf32>
    %268 = arith.divf %266, %267 : vector<8x128xf32>
    %269 = vector.extract_strided_slice %256 {offsets = [0, 256], sizes = [8, 128], strides = [1, 1]} : vector<8x384xf32> to vector<8x128xf32>
    %c0_49 = arith.constant 0 : index
    %c0_50 = arith.constant 0 : index
    %270 = vector.load %arg7[%c0_49, %c0_50] : memref<1x128xf32, #tpu.memory_space<vmem>>, vector<1x128xf32>
    %271 = vector.shape_cast %270 : vector<1x128xf32> to vector<1x128xf32>
    %272 = vector.broadcast %271 : vector<1x128xf32> to vector<8x128xf32>
    %273 = arith.mulf %262, %272 : vector<8x128xf32>
    %274 = arith.addf %269, %273 : vector<8x128xf32>
    %275 = math.tanh %274 : vector<8x128xf32>
    %cst_51 = arith.constant 1.000000e+00 : f32
    %276 = vector.broadcast %cst_51 : f32 to vector<8x128xf32>
    %277 = arith.subf %276, %268 : vector<8x128xf32>
    %278 = arith.mulf %277, %275 : vector<8x128xf32>
    %279 = arith.truncf %250 : vector<8x128xf32> to vector<8x128xbf16>
    %c0_52 = arith.constant 0 : index
    %c0_53 = arith.constant 0 : index
    %280 = vector.load %arg8[%c0_52, %c0_53] : memref<128x256xbf16, #tpu.memory_space<vmem>>, vector<128x256xbf16>
    %cst_54 = arith.constant dense<0.000000e+00> : vector<8x256xf32>
    %281 = tpu.matmul %279, %280, %cst_54 {dimension_numbers = #tpu.dot_dimension_numbers<[1], [0], [0], [1], [0, 0, 1, 1], [], []>} : vector<8x128xbf16>, vector<128x256xbf16>, vector<8x256xf32> -> vector<8x256xf32>
    %282 = arith.truncf %278 : vector<8x128xf32> to vector<8x128xbf16>
    %c0_55 = arith.constant 0 : index
    %c0_56 = arith.constant 0 : index
    %283 = vector.load %arg9[%c0_55, %c0_56] : memref<128x256xbf16, #tpu.memory_space<vmem>>, vector<128x256xbf16>
    %cst_57 = arith.constant dense<0.000000e+00> : vector<8x256xf32>
    %284 = tpu.matmul %282, %283, %cst_57 {dimension_numbers = #tpu.dot_dimension_numbers<[1], [0], [0], [1], [0, 0, 1, 1], [], []>} : vector<8x128xbf16>, vector<128x256xbf16>, vector<8x256xf32> -> vector<8x256xf32>
    %285 = arith.addf %281, %284 : vector<8x256xf32>
    %c0_58 = arith.constant 0 : index
    %c0_59 = arith.constant 0 : index
    %286 = vector.load %arg10[%c0_58, %c0_59] : memref<1x256xf32, #tpu.memory_space<vmem>>, vector<1x256xf32>
    %287 = vector.broadcast %286 : vector<1x256xf32> to vector<8x256xf32>
    %288 = arith.addf %285, %287 : vector<8x256xf32>
    %cst_60 = arith.constant 0.000000e+00 : f32
    %289 = vector.broadcast %cst_60 : f32 to vector<8x256xf32>
    %290 = arith.maximumf %288, %289 : vector<8x256xf32>
    %c0_61 = arith.constant 0 : index
    %c0_62 = arith.constant 0 : index
    %291 = vector.load %arg15[%c0_61, %c0_62] : memref<8x256xf32, #tpu.memory_space<vmem>>, vector<8x256xf32>
    %292 = arith.mulf %290, %291 : vector<8x256xf32>
    %293 = arith.truncf %292 : vector<8x256xf32> to vector<8x256xbf16>
    %c0_63 = arith.constant 0 : index
    %c0_64 = arith.constant 0 : index
    %294 = vector.load %arg11[%c0_63, %c0_64] : memref<256x128xbf16, #tpu.memory_space<vmem>>, vector<256x128xbf16>
    %cst_65 = arith.constant dense<0.000000e+00> : vector<8x128xf32>
    %295 = tpu.matmul %293, %294, %cst_65 {dimension_numbers = #tpu.dot_dimension_numbers<[1], [0], [0], [1], [0, 0, 1, 1], [], []>} : vector<8x256xbf16>, vector<256x128xbf16>, vector<8x128xf32> -> vector<8x128xf32>
    %c0_66 = arith.constant 0 : index
    %c0_67 = arith.constant 0 : index
    %296 = vector.load %arg12[%c0_66, %c0_67] : memref<1x128xf32, #tpu.memory_space<vmem>>, vector<1x128xf32>
    %297 = vector.broadcast %296 : vector<1x128xf32> to vector<8x128xf32>
    %298 = arith.addf %295, %297 : vector<8x128xf32>
    %cst_68 = arith.constant 0.000000e+00 : f32
    %299 = vector.broadcast %cst_68 : f32 to vector<8x128xf32>
    %300 = arith.maximumf %298, %299 : vector<8x128xf32>
    %c0_69 = arith.constant 0 : index
    %c0_70 = arith.constant 0 : index
    %301 = vector.load %arg16[%c0_69, %c0_70] : memref<8x128xf32, #tpu.memory_space<vmem>>, vector<8x128xf32>
    %302 = arith.mulf %300, %301 : vector<8x128xf32>
    %303 = arith.truncf %302 : vector<8x128xf32> to vector<8x128xbf16>
    %c0_71 = arith.constant 0 : index
    %c0_72 = arith.constant 0 : index
    %304 = vector.load %arg13[%c0_71, %c0_72] : memref<128x128xbf16, #tpu.memory_space<vmem>>, vector<128x128xbf16>
    %cst_73 = arith.constant dense<0.000000e+00> : vector<8x128xf32>
    %305 = tpu.matmul %303, %304, %cst_73 {dimension_numbers = #tpu.dot_dimension_numbers<[1], [0], [0], [1], [0, 0, 1, 1], [], []>} : vector<8x128xbf16>, vector<128x128xbf16>, vector<8x128xf32> -> vector<8x128xf32>
    %c0_74 = arith.constant 0 : index
    %c0_75 = arith.constant 0 : index
    %306 = vector.load %arg14[%c0_74, %c0_75] : memref<1x128xf32, #tpu.memory_space<vmem>>, vector<1x128xf32>
    %307 = vector.broadcast %306 : vector<1x128xf32> to vector<8x128xf32>
    %308 = arith.addf %305, %307 : vector<8x128xf32>
    %c0_76 = arith.constant 0 : index
    %c0_77 = arith.constant 0 : index
    %309 = vector.load %arg17[%c0_76, %c0_77] : memref<8x128xf32, #tpu.memory_space<vmem>>, vector<8x128xf32>
    tpu.vector_store %arg17[%c0_76, %c0_77], %308 {strides = array<i32>} : memref<8x128xf32, #tpu.memory_space<vmem>>, vector<8x128xf32>,
    return
  }
}

</mosaic_0001>

<llo_original>
// kernel: e2ernn_forward.1
$region0: #{e2ernn_forward.1}
  #allocation0 [shape = 'u32[]', space=smem, size = 0x4, offset = 0x4, fixed_abs, tag = 'smem constant byte address 0x4 - core index']
  #allocation1 [shape = 'u32[144,128]{1,0:T(1,128)}', space=vmem, size = 0x12000, scoped, tag = 'internal scratch']
  %s0 = inlined_call_operand.vmem [shape: bf16[64,32], index: 0, kind: input, shape index: {}]
  %s1 = inlined_call_operand.vmem [shape: bf16[32,384], index: 1, kind: input, shape index: {}]
  %s2 = inlined_call_operand.vmem [shape: bf16[128,384], index: 2, kind: input, shape index: {}]
  %s3 = inlined_call_operand.hbm [shape: f32[1,384], index: 3, kind: input, shape index: {}]
  %s4 = inlined_call_operand.hbm [shape: f32[1,128], index: 4, kind: input, shape index: {}]
  %s5 = inlined_call_operand.hbm [shape: bf16[32,384], index: 5, kind: input, shape index: {}]
  %s6 = inlined_call_operand.hbm [shape: f32[1,384], index: 6, kind: input, shape index: {}]
  %s7 = inlined_call_operand.hbm [shape: f32[1,128], index: 7, kind: input, shape index: {}]
  %s8 = inlined_call_operand.vmem [shape: bf16[128,256], index: 8, kind: input, shape index: {}]
  %s9 = inlined_call_operand.hbm [shape: bf16[128,256], index: 9, kind: input, shape index: {}]
  %s10 = inlined_call_operand.vmem [shape: f32[1,256], index: 10, kind: input, shape index: {}]
  %s11 = inlined_call_operand.hbm [shape: bf16[256,128], index: 11, kind: input, shape index: {}]
  %s12 = inlined_call_operand.hbm [shape: f32[1,128], index: 12, kind: input, shape index: {}]
  %s13 = inlined_call_operand.vmem [shape: bf16[128,128], index: 13, kind: input, shape index: {}]
  %s14 = inlined_call_operand.hbm [shape: f32[1,128], index: 14, kind: input, shape index: {}]
  %s15 = inlined_call_operand.vmem [shape: f32[8,256], index: 15, kind: input, shape index: {}]
  %s16 = inlined_call_operand.vmem [shape: f32[8,128], index: 16, kind: input, shape index: {}]
  %s17 = inlined_call_operand.vmem [shape: f32[8,128], index: 17, kind: output, shape index: {}]
  %s18 = sld [smem:[#allocation0]]
  $region114: #{e2ernn_forward.1} parent=0
    _
  %s20 = ssub.s32 1, %s18
  %s21 = scalar_select 0, %s20, %s18
  $region1: #{e2ernn_forward.1} parent=0
    #allocation2 [shape = 'u8[1536]{0}', space=vmem, size = 0x800, scoped, tag = 'input window, operand 3, single buffered']
    #allocation3 [shape = 's32[1]{0}', space=sflag, size = 0x4, scoped, tag = 'scoped memory for e2ernn_forward.1']
    #allocation4 [shape = 'u8[512]{0}', space=vmem, size = 0x400, scoped, tag = 'input window, operand 4, single buffered']
    #allocation5 [shape = 's32[1]{0}', space=sflag, size = 0x4, scoped, tag = 'scoped memory for e2ernn_forward.1']
    #allocation6 [shape = 'u8[24576]{0}', space=vmem, size = 0x6000, scoped, tag = 'input window, operand 5, single buffered']
    #allocation7 [shape = 'u8[1536]{0}', space=vmem, size = 0x800, scoped, tag = 'input window, operand 6, single buffered']
    #allocation8 [shape = 's32[1]{0}', space=sflag, size = 0x4, scoped, tag = 'scoped memory for e2ernn_forward.1']
    #allocation9 [shape = 'u8[512]{0}', space=vmem, size = 0x400, scoped, tag = 'input window, operand 7, single buffered']
    #allocation10 [shape = 'u8[65536]{0}', space=vmem, size = 0x10000, scoped, tag = 'input window, operand 9, single buffered']
    #allocation11 [shape = 's32[1]{0}', space=sflag, size = 0x4, scoped, tag = 'scoped memory for e2ernn_forward.1']
    #allocation12 [shape = 'u8[65536]{0}', space=vmem, size = 0x10000, scoped, tag = 'input window, operand 11, single buffered']
    #allocation13 [shape = 'u8[512]{0}', space=vmem, size = 0x400, scoped, tag = 'input window, operand 12, single buffered']
    #allocation14 [shape = 's32[1]{0}', space=sflag, size = 0x4, scoped, tag = 'scoped memory for e2ernn_forward.1']
    #allocation15 [shape = 'u8[512]{0}', space=vmem, size = 0x400, scoped, tag = 'input window, operand 14, single buffered']
    %22 = vsyncpa [#allocation3], 0
    %23 = vsyncpa [#allocation5], 0
    %24 = vsyncpa [#allocation8], 0
    %25 = vsyncpa [#allocation11], 0
    %26 = vsyncpa [#allocation14], 0
    // Predicated region
    $region2: #{e2ernn_forward.1} parent=1 // pred_check
      _
    $region3: #{e2ernn_forward.1} parent=1 // pred_check_branch
      %28 = sbr.rel (0) target = $region5
    $region4: #{e2ernn_forward.1} parent=1 // pred_region
      _
    $region5: #{e2ernn_forward.1} parent=1 // pred_fallthru
      _
    // Predicated region
    $region6: #{e2ernn_forward.1} parent=1 // pred_check
      _
    $region7: #{e2ernn_forward.1} parent=1 // pred_check_branch
      %30 = sbr.rel (0) target = $region9
    $region8: #{e2ernn_forward.1} parent=1 // pred_region
      _
    $region9: #{e2ernn_forward.1} parent=1 // pred_fallthru
      _
    // Predicated region
    $region10: #{e2ernn_forward.1} parent=1 // pred_check
      _
    $region11: #{e2ernn_forward.1} parent=1 // pred_check_branch
      %32 = sbr.rel (0) target = $region13
    $region12: #{e2ernn_forward.1} parent=1 // pred_region
      _
    $region13: #{e2ernn_forward.1} parent=1 // pred_fallthru
      _
    // Predicated region
    $region14: #{e2ernn_forward.1} parent=1 // pred_check
      _
    $region15: #{e2ernn_forward.1} parent=1 // pred_check_branch
      %34 = sbr.rel (0) target = $region17
    $region16: #{e2ernn_forward.1} parent=1 // pred_region
      %s36 = ssub.s32 48, 48
      %37 = vsyncadd [#allocation3], %s36
      %s39 = sshll.u32 [#allocation2], 4
      %s40 = int_to_ptr.vmem [resolvable:$true] %s39
      %42 = dma.hbm_to_vmem [thread:$0]  %s3, 48, %s40, [#allocation3]
    $region17: #{e2ernn_forward.1} parent=1 // pred_fallthru
      _
    // Predicated region
    $region18: #{e2ernn_forward.1} parent=1 // pred_check
      _
    $region19: #{e2ernn_forward.1} parent=1 // pred_check_branch
      %44 = sbr.rel (0) target = $region21
    $region20: #{e2ernn_forward.1} parent=1 // pred_region
      %s46 = ssub.s32 16, 16
      %47 = vsyncadd [#allocation5], %s46
      %s49 = sshll.u32 [#allocation4], 4
      %s50 = int_to_ptr.vmem [resolvable:$true] %s49
      %52 = dma.hbm_to_vmem [thread:$0]  %s4, 16, %s50, [#allocation5]
    $region21: #{e2ernn_forward.1} parent=1 // pred_fallthru
      _
    // Predicated region
    $region22: #{e2ernn_forward.1} parent=1 // pred_check
      _
    $region23: #{e2ernn_forward.1} parent=1 // pred_check_branch
      %54 = sbr.rel (0) target = $region25
    $region24: #{e2ernn_forward.1} parent=1 // pred_region
      %s56 = ssub.s32 768, 768
      %57 = vsyncadd [#allocation5], %s56
      %s58 = sshll.u32 [#allocation6], 4
      %s59 = int_to_ptr.vmem [resolvable:$true] %s58
      %64 = dma.hbm_to_vmem [thread:$0]  %s5, 768, %s59, [#allocation5], 192, 192, 12
    $region25: #{e2ernn_forward.1} parent=1 // pred_fallthru
      _
    // Predicated region
    $region26: #{e2ernn_forward.1} parent=1 // pred_check
      _
    $region27: #{e2ernn_forward.1} parent=1 // pred_check_branch
      %66 = sbr.rel (0) target = $region29
    $region28: #{e2ernn_forward.1} parent=1 // pred_region
      %s68 = ssub.s32 48, 48
      %69 = vsyncadd [#allocation8], %s68
      %s71 = sshll.u32 [#allocation7], 4
      %s72 = int_to_ptr.vmem [resolvable:$true] %s71
      %74 = dma.hbm_to_vmem [thread:$0]  %s6, 48, %s72, [#allocation8]
    $region29: #{e2ernn_forward.1} parent=1 // pred_fallthru
      _
    // Predicated region
    $region30: #{e2ernn_forward.1} parent=1 // pred_check
      _
    $region31: #{e2ernn_forward.1} parent=1 // pred_check_branch
      %76 = sbr.rel (0) target = $region33
    $region32: #{e2ernn_forward.1} parent=1 // pred_region
      %s78 = ssub.s32 16, 16
      %79 = vsyncadd [#allocation8], %s78
      %s81 = sshll.u32 [#allocation9], 4
      %s82 = int_to_ptr.vmem [resolvable:$true] %s81
      %84 = dma.hbm_to_vmem [thread:$0]  %s7, 16, %s82, [#allocation8]
    $region33: #{e2ernn_forward.1} parent=1 // pred_fallthru
      _
    // Predicated region
    $region34: #{e2ernn_forward.1} parent=1 // pred_check
      _
    $region35: #{e2ernn_forward.1} parent=1 // pred_check_branch
      %86 = sbr.rel (0) target = $region37
    $region36: #{e2ernn_forward.1} parent=1 // pred_region
      _
    $region37: #{e2ernn_forward.1} parent=1 // pred_fallthru
      _
    // Predicated region
    $region38: #{e2ernn_forward.1} parent=1 // pred_check
      _
    $region39: #{e2ernn_forward.1} parent=1 // pred_check_branch
      %88 = sbr.rel (0) target = $region41
    $region40: #{e2ernn_forward.1} parent=1 // pred_region
      %s90 = ssub.s32 2048, 2048
      %91 = vsyncadd [#allocation11], %s90
      %s92 = sshll.u32 [#allocation10], 4
      %s93 = int_to_ptr.vmem [resolvable:$true] %s92
      %98 = dma.hbm_to_vmem [thread:$0]  %s9, 2048, %s93, [#allocation11], 128, 128, 8
    $region41: #{e2ernn_forward.1} parent=1 // pred_fallthru
      _
    // Predicated region
    $region42: #{e2ernn_forward.1} parent=1 // pred_check
      _
    $region43: #{e2ernn_forward.1} parent=1 // pred_check_branch
      %100 = sbr.rel (0) target = $region45
    $region44: #{e2ernn_forward.1} parent=1 // pred_region
      _
    $region45: #{e2ernn_forward.1} parent=1 // pred_fallthru
      _
    // Predicated region
    $region46: #{e2ernn_forward.1} parent=1 // pred_check
      _
    $region47: #{e2ernn_forward.1} parent=1 // pred_check_branch
      %102 = sbr.rel (0) target = $region49
    $region48: #{e2ernn_forward.1} parent=1 // pred_region
      %s104 = ssub.s32 2048, 2048
      %105 = vsyncadd [#allocation11], %s104
      %s106 = sshll.u32 [#allocation12], 4
      %s107 = int_to_ptr.vmem [resolvable:$true] %s106
      %112 = dma.hbm_to_vmem [thread:$0]  %s11, 2048, %s107, [#allocation11], 64, 64, 4
    $region49: #{e2ernn_forward.1} parent=1 // pred_fallthru
      _
    // Predicated region
    $region50: #{e2ernn_forward.1} parent=1 // pred_check
      _
    $region51: #{e2ernn_forward.1} parent=1 // pred_check_branch
      %114 = sbr.rel (0) target = $region53
    $region52: #{e2ernn_forward.1} parent=1 // pred_region
      %s116 = ssub.s32 16, 16
      %117 = vsyncadd [#allocation14], %s116
      %s119 = sshll.u32 [#allocation13], 4
      %s120 = int_to_ptr.vmem [resolvable:$true] %s119
      %122 = dma.hbm_to_vmem [thread:$0]  %s12, 16, %s120, [#allocation14]
    $region53: #{e2ernn_forward.1} parent=1 // pred_fallthru
      _
    // Predicated region
    $region54: #{e2ernn_forward.1} parent=1 // pred_check
      _
    $region55: #{e2ernn_forward.1} parent=1 // pred_check_branch
      %124 = sbr.rel (0) target = $region57
    $region56: #{e2ernn_forward.1} parent=1 // pred_region
      _
    $region57: #{e2ernn_forward.1} parent=1 // pred_fallthru
      _
    // Predicated region
    $region58: #{e2ernn_forward.1} parent=1 // pred_check
      _
    $region59: #{e2ernn_forward.1} parent=1 // pred_check_branch
      %126 = sbr.rel (0) target = $region61
    $region60: #{e2ernn_forward.1} parent=1 // pred_region
      %s128 = ssub.s32 16, 16
      %129 = vsyncadd [#allocation14], %s128
      %s131 = sshll.u32 [#allocation15], 4
      %s132 = int_to_ptr.vmem [resolvable:$true] %s131
      %134 = dma.hbm_to_vmem [thread:$0]  %s14, 16, %s132, [#allocation14]
    $region61: #{e2ernn_forward.1} parent=1 // pred_fallthru
      _
    // Predicated region
    $region62: #{e2ernn_forward.1} parent=1 // pred_check
      _
    $region63: #{e2ernn_forward.1} parent=1 // pred_check_branch
      %136 = sbr.rel (0) target = $region65
    $region64: #{e2ernn_forward.1} parent=1 // pred_region
      _
    $region65: #{e2ernn_forward.1} parent=1 // pred_fallthru
      _
    // Predicated region
    $region66: #{e2ernn_forward.1} parent=1 // pred_check
      _
    $region67: #{e2ernn_forward.1} parent=1 // pred_check_branch
      %138 = sbr.rel (0) target = $region69
    $region68: #{e2ernn_forward.1} parent=1 // pred_region
      _
    $region69: #{e2ernn_forward.1} parent=1 // pred_fallthru
      _
    // Predicated region
    $region70: #{e2ernn_forward.1} parent=1 // pred_check
      _
    $region71: #{e2ernn_forward.1} parent=1 // pred_check_branch
      %140 = sbr.rel (0) target = $region73
    $region72: #{e2ernn_forward.1} parent=1 // pred_region
      %141 = dma.done [#allocation3], 48
    $region73: #{e2ernn_forward.1} parent=1 // pred_fallthru
      _
    // Predicated region
    $region74: #{e2ernn_forward.1} parent=1 // pred_check
      _
    $region75: #{e2ernn_forward.1} parent=1 // pred_check_branch
      %143 = sbr.rel (0) target = $region77
    $region76: #{e2ernn_forward.1} parent=1 // pred_region
      %144 = dma.done [#allocation5], 16
    $region77: #{e2ernn_forward.1} parent=1 // pred_fallthru
      _
    // Predicated region
    $region78: #{e2ernn_forward.1} parent=1 // pred_check
      _
    $region79: #{e2ernn_forward.1} parent=1 // pred_check_branch
      %146 = sbr.rel (0) target = $region81
    $region80: #{e2ernn_forward.1} parent=1 // pred_region
      %147 = dma.done [#allocation5], 768
    $region81: #{e2ernn_forward.1} parent=1 // pred_fallthru
      _
    // Predicated region
    $region82: #{e2ernn_forward.1} parent=1 // pred_check
      _
    $region83: #{e2ernn_forward.1} parent=1 // pred_check_branch
      %149 = sbr.rel (0) target = $region85
    $region84: #{e2ernn_forward.1} parent=1 // pred_region
      %150 = dma.done [#allocation8], 48
    $region85: #{e2ernn_forward.1} parent=1 // pred_fallthru
      _
    // Predicated region
    $region86: #{e2ernn_forward.1} parent=1 // pred_check
      _
    $region87: #{e2ernn_forward.1} parent=1 // pred_check_branch
      %152 = sbr.rel (0) target = $region89
    $region88: #{e2ernn_forward.1} parent=1 // pred_region
      %153 = dma.done [#allocation8], 16
    $region89: #{e2ernn_forward.1} parent=1 // pred_fallthru
      _
    // Predicated region
    $region90: #{e2ernn_forward.1} parent=1 // pred_check
      _
    $region91: #{e2ernn_forward.1} parent=1 // pred_check_branch
      %155 = sbr.rel (0) target = $region93
    $region92: #{e2ernn_forward.1} parent=1 // pred_region
      %156 = dma.done [#allocation11], 2048
    $region93: #{e2ernn_forward.1} parent=1 // pred_fallthru
      _
    // Predicated region
    $region94: #{e2ernn_forward.1} parent=1 // pred_check
      _
    $region95: #{e2ernn_forward.1} parent=1 // pred_check_branch
      %158 = sbr.rel (0) target = $region97
    $region96: #{e2ernn_forward.1} parent=1 // pred_region
      %159 = dma.done [#allocation11], 2048
    $region97: #{e2ernn_forward.1} parent=1 // pred_fallthru
      _
    // Predicated region
    $region98: #{e2ernn_forward.1} parent=1 // pred_check
      _
    $region99: #{e2ernn_forward.1} parent=1 // pred_check_branch
      %161 = sbr.rel (0) target = $region101
    $region100: #{e2ernn_forward.1} parent=1 // pred_region
      %162 = dma.done [#allocation14], 16
    $region101: #{e2ernn_forward.1} parent=1 // pred_fallthru
      _
    // Predicated region
    $region102: #{e2ernn_forward.1} parent=1 // pred_check
      _
    $region103: #{e2ernn_forward.1} parent=1 // pred_check_branch
      %164 = sbr.rel (0) target = $region105
    $region104: #{e2ernn_forward.1} parent=1 // pred_region
      %165 = dma.done [#allocation14], 16
    $region105: #{e2ernn_forward.1} parent=1 // pred_fallthru
      _
    %v167 = vld [vmem:[%s0] sm:$0xf]
    %v168 = vld [vmem:[%s0 + $0x4] sm:$0xf]
    %v169 = vld [vmem:[%s0 + $0x8] sm:$0xf]
    %v170 = vld [vmem:[%s0 + $0xc] sm:$0xf]
    %v171 = vld [vmem:[%s0 + $0x10] sm:$0xf]
    %v172 = vld [vmem:[%s0 + $0x14] sm:$0xf]
    %v173 = vld [vmem:[%s0 + $0x18] sm:$0xf]
    %v174 = vld [vmem:[%s0 + $0x1c] sm:$0xf]
    %v175 = vld [vmem:[%s1] sm:$0xff]
    %v176 = vld [vmem:[%s1 + $0x8] sm:$0xf]
    %v177 = vld [vmem:[%s1 + $0xc] sm:$0xff]
    %v178 = vld [vmem:[%s1 + $0x14] sm:$0xf]
    %v179 = vld [vmem:[%s1 + $0x18] sm:$0xff]
    %v180 = vld [vmem:[%s1 + $0x20] sm:$0xf]
    %v181 = vld [vmem:[%s1 + $0x24] sm:$0xff]
    %v182 = vld [vmem:[%s1 + $0x2c] sm:$0xf]
    %v183 = vld [vmem:[#allocation2] sm:$0x7]
    %v185 = vlaneseq
    %v186 = vshrl.u32 %v185, 7
    %v187 = vsub.s32 0, %v186
    %v188 = vrot.slane %v183, %v187
    %v189 = vlaneseq
    %v190 = vshrl.u32 %v189, 7
    %v191 = vsub.s32 1, %v190
    %v192 = vrot.slane %v183, %v191
    %v193 = vlaneseq
    %v194 = vshrl.u32 %v193, 7
    %v195 = vsub.s32 2, %v194
    %v196 = vrot.slane %v183, %v195
    %v208 = vunpack.c.l.b16 %v167
    %v209 = vunpack.c.l.b16 %v168
    %v210 = vunpack.c.l.b16 %v169
    %v211 = vunpack.c.l.b16 %v170
    %v212 = vunpack.c.l.b16 %v171
    %v213 = vunpack.c.l.b16 %v172
    %v214 = vunpack.c.l.b16 %v173
    %v215 = vunpack.c.l.b16 %v174
    %v216 = vpack.c.b16 %v209, %v208
    %v217 = vpack.c.b16 %v211, %v210
    %v218 = vpack.c.b16 %v213, %v212
    %v219 = vpack.c.b16 %v215, %v214
    %v228 = vunpack.c.l.b16 %v175
    %v229 = vunpack.c.h.b16 %v175
    %v230 = vunpack.c.l.b16 %v176
    %v231 = vunpack.c.l.b16 %v177
    %v232 = vunpack.c.h.b16 %v177
    %v233 = vunpack.c.l.b16 %v178
    %v234 = vunpack.c.l.b16 %v179
    %v235 = vunpack.c.h.b16 %v179
    %v236 = vunpack.c.l.b16 %v180
    %v237 = vunpack.c.l.b16 %v181
    %v238 = vunpack.c.h.b16 %v181
    %v239 = vunpack.c.l.b16 %v182
    %v240 = vpack.c.b16 %v231, %v228
    %v241 = vpack.c.b16 %v232, %v229
    %v242 = vpack.c.b16 %v233, %v230
    %v243 = vpack.c.b16 %v237, %v234
    %v244 = vpack.c.b16 %v238, %v235
    %v245 = vpack.c.b16 %v239, %v236
    %vm252 = vcmask 261120
    %v254 = vsel %vm252, %v216, 0
    %v257 = vsel %vm252, %v217, 0
    %v260 = vsel %vm252, %v218, 0
    %v263 = vsel %vm252, %v219, 0
    %265 = vmatprep.subr.bf16.mxu0 %v241
    %266 = vmatpush1.bf16.msra.mxu0 %v240
    %267 = vmatprep.subr.bf16.mxu0 %v244
    %268 = vmatpush1.bf16.msra.mxu0 %v243
    %269 = vmatprep.subr.bf16.mxu0 0
    %270 = vmatpush1.bf16.msra.mxu0 0
    %271 = vmatprep.subr.bf16.mxu0 0
    %272 = vmatpush1.bf16.msra.mxu0 0
    %273 = vmatprep.subr.bf16.mxu0 0
    %274 = vmatpush1.bf16.msra.mxu0 0
    %275 = vmatprep.subr.bf16.mxu0 0
    %276 = vmatpush1.bf16.msra.mxu0 0
    %277 = vmatprep.subr.bf16.mxu0 0
    %278 = vmatpush1.bf16.msra.mxu0 0
    %279 = vmatprep.subr.bf16.mxu0 0
    %280 = vmatpush1.bf16.msra.mxu0 0
    %281 = vmatprep.subr.bf16.mxu0 0
    %282 = vmatpush1.bf16.msra.mxu0 0
    %283 = vmatprep.subr.bf16.mxu0 0
    %284 = vmatpush1.bf16.msra.mxu0 0
    %285 = vmatprep.subr.bf16.mxu0 0
    %286 = vmatpush1.bf16.msra.mxu0 0
    %287 = vmatprep.subr.bf16.mxu0 0
    %288 = vmatpush1.bf16.msra.mxu0 0
    %289 = vmatprep.subr.bf16.mxu0 0
    %290 = vmatpush1.bf16.msra.mxu0 0
    %291 = vmatprep.subr.bf16.mxu0 0
    %292 = vmatpush1.bf16.msra.mxu0 0
    %293 = vmatprep.subr.bf16.mxu0 0
    %294 = vmatpush1.bf16.msra.mxu0 0
    %295 = vmatprep.subr.bf16.mxu0 0
    %296 = vmatpush1.bf16.msra.mxu0 0
    %297 = vmatprep.mubr.bf16.mxu0 0
    %298 = vmatmul.mubr.bf16.gmra.mrb[0].mxu0 %v254
    %v299 = vpop.f32.mrb[0].mxu0
    %v300 = vadd.f32 %v188, %v299
    %v301 = vpop.f32.mrb[0].mxu0
    %v302 = vadd.f32 %v192, %v301
    %v303 = vpop.f32.mrb[0].mxu0
    %v304 = vadd.f32 %v188, %v303
    %v305 = vpop.f32.mrb[0].mxu0
    %v306 = vadd.f32 %v192, %v305
    %307 = vmatprep.mubr.bf16.mxu0 0
    %308 = vmatmul.mubr.bf16.gmra.mrb[0].mxu0 %v257
    %v309 = vpop.f32.mrb[0].mxu0
    %v310 = vadd.f32 %v188, %v309
    %v311 = vpop.f32.mrb[0].mxu0
    %v312 = vadd.f32 %v192, %v311
    %v313 = vpop.f32.mrb[0].mxu0
    %v314 = vadd.f32 %v188, %v313
    %v315 = vpop.f32.mrb[0].mxu0
    %v316 = vadd.f32 %v192, %v315
    %317 = vmatprep.mubr.bf16.mxu0 0
    %318 = vmatmul.mubr.bf16.gmra.mrb[0].mxu0 %v260
    %v319 = vpop.f32.mrb[0].mxu0
    %v320 = vadd.f32 %v188, %v319
    %v321 = vpop.f32.mrb[0].mxu0
    %v322 = vadd.f32 %v192, %v321
    %v323 = vpop.f32.mrb[0].mxu0
    %v324 = vadd.f32 %v188, %v323
    %v325 = vpop.f32.mrb[0].mxu0
    %v326 = vadd.f32 %v192, %v325
    %327 = vmatprep.mubr.bf16.mxu0 0
    %328 = vmatmul.mubr.bf16.gmra.mrb[0].mxu0 %v263
    %v329 = vpop.f32.mrb[0].mxu0
    %v330 = vadd.f32 %v188, %v329
    %v331 = vpop.f32.mrb[0].mxu0
    %v332 = vadd.f32 %v192, %v331
    %v333 = vpop.f32.mrb[0].mxu0
    %v334 = vadd.f32 %v188, %v333
    %v335 = vpop.f32.mrb[0].mxu0
    %v336 = vadd.f32 %v192, %v335
    %337 = vdwg.mxu0
    %338 = vmatprep.subr.bf16.mxu0 0
    %339 = vmatpush1.bf16.msra.mxu0 %v242
    %340 = vmatprep.subr.bf16.mxu0 0
    %341 = vmatpush1.bf16.msra.mxu0 %v245
    %342 = vmatprep.subr.bf16.mxu0 0
    %343 = vmatpush1.bf16.msra.mxu0 0
    %344 = vmatprep.subr.bf16.mxu0 0
    %345 = vmatpush1.bf16.msra.mxu0 0
    %346 = vmatprep.subr.bf16.mxu0 0
    %347 = vmatpush1.bf16.msra.mxu0 0
    %348 = vmatprep.subr.bf16.mxu0 0
    %349 = vmatpush1.bf16.msra.mxu0 0
    %350 = vmatprep.subr.bf16.mxu0 0
    %351 = vmatpush1.bf16.msra.mxu0 0
    %352 = vmatprep.subr.bf16.mxu0 0
    %353 = vmatpush1.bf16.msra.mxu0 0
    %354 = vmatprep.subr.bf16.mxu0 0
    %355 = vmatpush1.bf16.msra.mxu0 0
    %356 = vmatprep.subr.bf16.mxu0 0
    %357 = vmatpush1.bf16.msra.mxu0 0
    %358 = vmatprep.subr.bf16.mxu0 0
    %359 = vmatpush1.bf16.msra.mxu0 0
    %360 = vmatprep.subr.bf16.mxu0 0
    %361 = vmatpush1.bf16.msra.mxu0 0
    %362 = vmatprep.subr.bf16.mxu0 0
    %363 = vmatpush1.bf16.msra.mxu0 0
    %364 = vmatprep.subr.bf16.mxu0 0
    %365 = vmatpush1.bf16.msra.mxu0 0
    %366 = vmatprep.subr.bf16.mxu0 0
    %367 = vmatpush1.bf16.msra.mxu0 0
    %368 = vmatprep.subr.bf16.mxu0 0
    %369 = vmatpush1.bf16.msra.mxu0 0
    %370 = vmatprep.mubr.bf16.mxu0 0
    %371 = vmatmul.mubr.bf16.gmra.mrb[0].mxu0 %v254
    %v372 = vpop.f32.mrb[0].mxu0
    %v373 = vadd.f32 %v196, %v372
    %v374 = vpop.f32.mrb[0].mxu0
    %v375 = vpop.f32.mrb[0].mxu0
    %v376 = vadd.f32 %v196, %v375
    %v377 = vpop.f32.mrb[0].mxu0
    %378 = vmatprep.mubr.bf16.mxu0 0
    %379 = vmatmul.mubr.bf16.gmra.mrb[0].mxu0 %v257
    %v380 = vpop.f32.mrb[0].mxu0
    %v381 = vadd.f32 %v196, %v380
    %v382 = vpop.f32.mrb[0].mxu0
    %v383 = vpop.f32.mrb[0].mxu0
    %v384 = vadd.f32 %v196, %v383
    %v385 = vpop.f32.mrb[0].mxu0
    %386 = vmatprep.mubr.bf16.mxu0 0
    %387 = vmatmul.mubr.bf16.gmra.mrb[0].mxu0 %v260
    %v388 = vpop.f32.mrb[0].mxu0
    %v389 = vadd.f32 %v196, %v388
    %v390 = vpop.f32.mrb[0].mxu0
    %v391 = vpop.f32.mrb[0].mxu0
    %v392 = vadd.f32 %v196, %v391
    %v393 = vpop.f32.mrb[0].mxu0
    %394 = vmatprep.mubr.bf16.mxu0 0
    %395 = vmatmul.mubr.bf16.gmra.mrb[0].mxu0 %v263
    %v396 = vpop.f32.mrb[0].mxu0
    %v397 = vadd.f32 %v196, %v396
    %v398 = vpop.f32.mrb[0].mxu0
    %v399 = vpop.f32.mrb[0].mxu0
    %v400 = vadd.f32 %v196, %v399
    %v401 = vpop.f32.mrb[0].mxu0
    %402 = vdwg.mxu0
    %v403 = vld [vmem:[%s2] sm:$0xff]
    %v404 = vld [vmem:[%s2 + $0x8] sm:$0xf]
    %v405 = vld [vmem:[%s2 + $0xc] sm:$0xff]
    %v406 = vld [vmem:[%s2 + $0x14] sm:$0xf]
    %v407 = vld [vmem:[%s2 + $0x18] sm:$0xff]
    %v408 = vld [vmem:[%s2 + $0x20] sm:$0xf]
    %v409 = vld [vmem:[%s2 + $0x24] sm:$0xff]
    %v410 = vld [vmem:[%s2 + $0x2c] sm:$0xf]
    %v411 = vld [vmem:[%s2 + $0x30] sm:$0xff]
    %v412 = vld [vmem:[%s2 + $0x38] sm:$0xf]
    %v413 = vld [vmem:[%s2 + $0x3c] sm:$0xff]
    %v414 = vld [vmem:[%s2 + $0x44] sm:$0xf]
    %v415 = vld [vmem:[%s2 + $0x48] sm:$0xff]
    %v416 = vld [vmem:[%s2 + $0x50] sm:$0xf]
    %v417 = vld [vmem:[%s2 + $0x54] sm:$0xff]
    %v418 = vld [vmem:[%s2 + $0x5c] sm:$0xf]
    %v419 = vld [vmem:[%s2 + $0x60] sm:$0xff]
    %v420 = vld [vmem:[%s2 + $0x68] sm:$0xf]
    %v421 = vld [vmem:[%s2 + $0x6c] sm:$0xff]
    %v422 = vld [vmem:[%s2 + $0x74] sm:$0xf]
    %v423 = vld [vmem:[%s2 + $0x78] sm:$0xff]
    %v424 = vld [vmem:[%s2 + $0x80] sm:$0xf]
    %v425 = vld [vmem:[%s2 + $0x84] sm:$0xff]
    %v426 = vld [vmem:[%s2 + $0x8c] sm:$0xf]
    %v427 = vld [vmem:[%s2 + $0x90] sm:$0xff]
    %v428 = vld [vmem:[%s2 + $0x98] sm:$0xf]
    %v429 = vld [vmem:[%s2 + $0x9c] sm:$0xff]
    %v430 = vld [vmem:[%s2 + $0xa4] sm:$0xf]
    %v431 = vld [vmem:[%s2 + $0xa8] sm:$0xff]
    %v432 = vld [vmem:[%s2 + $0xb0] sm:$0xf]
    %v433 = vld [vmem:[%s2 + $0xb4] sm:$0xff]
    %v434 = vld [vmem:[%s2 + $0xbc] sm:$0xf]
    %v435 = vld [vmem:[#allocation4] sm:$0x1]
    %v437 = vlaneseq
    %v438 = vshrl.u32 %v437, 7
    %v439 = vsub.s32 0, %v438
    %v440 = vrot.slane %v435, %v439
    %v474 = vunpack.c.l.b16 %v403
    %v475 = vunpack.c.h.b16 %v403
    %v476 = vunpack.c.l.b16 %v404
    %v477 = vunpack.c.l.b16 %v405
    %v478 = vunpack.c.h.b16 %v405
    %v479 = vunpack.c.l.b16 %v406
    %v480 = vunpack.c.l.b16 %v407
    %v481 = vunpack.c.h.b16 %v407
    %v482 = vunpack.c.l.b16 %v408
    %v483 = vunpack.c.l.b16 %v409
    %v484 = vunpack.c.h.b16 %v409
    %v485 = vunpack.c.l.b16 %v410
    %v486 = vunpack.c.l.b16 %v411
    %v487 = vunpack.c.h.b16 %v411
    %v488 = vunpack.c.l.b16 %v412
    %v489 = vunpack.c.l.b16 %v413
    %v490 = vunpack.c.h.b16 %v413
    %v491 = vunpack.c.l.b16 %v414
    %v492 = vunpack.c.l.b16 %v415
    %v493 = vunpack.c.h.b16 %v415
    %v494 = vunpack.c.l.b16 %v416
    %v495 = vunpack.c.l.b16 %v417
    %v496 = vunpack.c.h.b16 %v417
    %v497 = vunpack.c.l.b16 %v418
    %v498 = vunpack.c.l.b16 %v419
    %v499 = vunpack.c.h.b16 %v419
    %v500 = vunpack.c.l.b16 %v420
    %v501 = vunpack.c.l.b16 %v421
    %v502 = vunpack.c.h.b16 %v421
    %v503 = vunpack.c.l.b16 %v422
    %v504 = vunpack.c.l.b16 %v423
    %v505 = vunpack.c.h.b16 %v423
    %v506 = vunpack.c.l.b16 %v424
    %v507 = vunpack.c.l.b16 %v425
    %v508 = vunpack.c.h.b16 %v425
    %v509 = vunpack.c.l.b16 %v426
    %v510 = vunpack.c.l.b16 %v427
    %v511 = vunpack.c.h.b16 %v427
    %v512 = vunpack.c.l.b16 %v428
    %v513 = vunpack.c.l.b16 %v429
    %v514 = vunpack.c.h.b16 %v429
    %v515 = vunpack.c.l.b16 %v430
    %v516 = vunpack.c.l.b16 %v431
    %v517 = vunpack.c.h.b16 %v431
    %v518 = vunpack.c.l.b16 %v432
    %v519 = vunpack.c.l.b16 %v433
    %v520 = vunpack.c.h.b16 %v433
    %v521 = vunpack.c.l.b16 %v434
    %v522 = vpack.c.b16 %v477, %v474
    %v523 = vpack.c.b16 %v478, %v475
    %v524 = vpack.c.b16 %v479, %v476
    %v525 = vpack.c.b16 %v483, %v480
    %v526 = vpack.c.b16 %v484, %v481
    %v527 = vpack.c.b16 %v485, %v482
    %v528 = vpack.c.b16 %v489, %v486
    %v529 = vpack.c.b16 %v490, %v487
    %v530 = vpack.c.b16 %v491, %v488
    %v531 = vpack.c.b16 %v495, %v492
    %v532 = vpack.c.b16 %v496, %v493
    %v533 = vpack.c.b16 %v497, %v494
    %v534 = vpack.c.b16 %v501, %v498
    %v535 = vpack.c.b16 %v502, %v499
    %v536 = vpack.c.b16 %v503, %v500
    %v537 = vpack.c.b16 %v507, %v504
    %v538 = vpack.c.b16 %v508, %v505
    %v539 = vpack.c.b16 %v509, %v506
    %v540 = vpack.c.b16 %v513, %v510
    %v541 = vpack.c.b16 %v514, %v511
    %v542 = vpack.c.b16 %v515, %v512
    %v543 = vpack.c.b16 %v519, %v516
    %v544 = vpack.c.b16 %v520, %v517
    %v545 = vpack.c.b16 %v521, %v518
    %570 = vmatprep.subr.bf16.mxu0 %v523
    %571 = vmatpush1.bf16.msra.mxu0 %v522
    %572 = vmatprep.subr.bf16.mxu0 %v526
    %573 = vmatpush1.bf16.msra.mxu0 %v525
    %574 = vmatprep.subr.bf16.mxu0 %v529
    %575 = vmatpush1.bf16.msra.mxu0 %v528
    %576 = vmatprep.subr.bf16.mxu0 %v532
    %577 = vmatpush1.bf16.msra.mxu0 %v531
    %578 = vmatprep.subr.bf16.mxu0 %v535
    %579 = vmatpush1.bf16.msra.mxu0 %v534
    %580 = vmatprep.subr.bf16.mxu0 %v538
    %581 = vmatpush1.bf16.msra.mxu0 %v537
    %582 = vmatprep.subr.bf16.mxu0 %v541
    %583 = vmatpush1.bf16.msra.mxu0 %v540
    %584 = vmatprep.subr.bf16.mxu0 %v544
    %585 = vmatpush1.bf16.msra.mxu0 %v543
    %586 = vmatprep.subr.bf16.mxu0 0
    %587 = vmatpush1.bf16.msra.mxu0 0
    %588 = vmatprep.subr.bf16.mxu0 0
    %589 = vmatpush1.bf16.msra.mxu0 0
    %590 = vmatprep.subr.bf16.mxu0 0
    %591 = vmatpush1.bf16.msra.mxu0 0
    %592 = vmatprep.subr.bf16.mxu0 0
    %593 = vmatpush1.bf16.msra.mxu0 0
    %594 = vmatprep.subr.bf16.mxu0 0
    %595 = vmatpush1.bf16.msra.mxu0 0
    %596 = vmatprep.subr.bf16.mxu0 0
    %597 = vmatpush1.bf16.msra.mxu0 0
    %598 = vmatprep.subr.bf16.mxu0 0
    %599 = vmatpush1.bf16.msra.mxu0 0
    %600 = vmatprep.subr.bf16.mxu0 0
    %601 = vmatpush1.bf16.msra.mxu0 0
    %602 = vmatprep.mubr.bf16.mxu0 0
    %603 = vmatmul.mubr.bf16.gmra.mrb[0].mxu0 0
    %v604 = vpop.f32.mrb[0].mxu0
    %v605 = vadd.f32 0.0, %v604
    %v606 = vpop.f32.mrb[0].mxu0
    %v607 = vadd.f32 0.0, %v606
    %v608 = vpop.f32.mrb[0].mxu0
    %v609 = vpop.f32.mrb[0].mxu0
    %610 = vdwg.mxu0
    %611 = vmatprep.subr.bf16.mxu0 0
    %612 = vmatpush1.bf16.msra.mxu0 %v524
    %613 = vmatprep.subr.bf16.mxu0 0
    %614 = vmatpush1.bf16.msra.mxu0 %v527
    %615 = vmatprep.subr.bf16.mxu0 0
    %616 = vmatpush1.bf16.msra.mxu0 %v530
    %617 = vmatprep.subr.bf16.mxu0 0
    %618 = vmatpush1.bf16.msra.mxu0 %v533
    %619 = vmatprep.subr.bf16.mxu0 0
    %620 = vmatpush1.bf16.msra.mxu0 %v536
    %621 = vmatprep.subr.bf16.mxu0 0
    %622 = vmatpush1.bf16.msra.mxu0 %v539
    %623 = vmatprep.subr.bf16.mxu0 0
    %624 = vmatpush1.bf16.msra.mxu0 %v542
    %625 = vmatprep.subr.bf16.mxu0 0
    %626 = vmatpush1.bf16.msra.mxu0 %v545
    %627 = vmatprep.subr.bf16.mxu0 0
    %628 = vmatpush1.bf16.msra.mxu0 0
    %629 = vmatprep.subr.bf16.mxu0 0
    %630 = vmatpush1.bf16.msra.mxu0 0
    %631 = vmatprep.subr.bf16.mxu0 0
    %632 = vmatpush1.bf16.msra.mxu0 0
    %633 = vmatprep.subr.bf16.mxu0 0
    %634 = vmatpush1.bf16.msra.mxu0 0
    %635 = vmatprep.subr.bf16.mxu0 0
    %636 = vmatpush1.bf16.msra.mxu0 0
    %637 = vmatprep.subr.bf16.mxu0 0
    %638 = vmatpush1.bf16.msra.mxu0 0
    %639 = vmatprep.subr.bf16.mxu0 0
    %640 = vmatpush1.bf16.msra.mxu0 0
    %641 = vmatprep.subr.bf16.mxu0 0
    %642 = vmatpush1.bf16.msra.mxu0 0
    %643 = vmatprep.mubr.bf16.mxu0 0
    %644 = vmatmul.mubr.bf16.gmra.mrb[0].mxu0 0
    %v645 = vpop.f32.mrb[0].mxu0
    %v646 = vadd.f32 0.0, %v645
    %v647 = vpop.f32.mrb[0].mxu0
    %v648 = vpop.f32.mrb[0].mxu0
    %v649 = vpop.f32.mrb[0].mxu0
    %650 = vdwg.mxu0
    %v651 = vadd.f32 %v300, %v605
    %v652 = vxor.u32 %v651, 2147483648
    %v653 = vmul.f32 %v652, 1.442695
    %v654 = vpow.pop %v653
    %v655 = vadd.f32 %v654, 1.0
    %v656 = vrcp.pop %v655
    %v657 = vmul.f32 1.0, %v656
    %v658 = vadd.f32 %v302, %v607
    %v659 = vxor.u32 %v658, 2147483648
    %v660 = vmul.f32 %v659, 1.442695
    %v661 = vpow.pop %v660
    %v662 = vadd.f32 %v661, 1.0
    %v663 = vrcp.pop %v662
    %v664 = vmul.f32 1.0, %v663
    %v665 = vadd.f32 %v646, %v440
    %v666 = vmul.f32 %v657, %v665
    %v667 = vadd.f32 %v373, %v666
    %v668 = vtanh.pop %v667
    %v669 = vsub.f32 1.0, %v664
    %v670 = vmul.f32 %v669, %v668
    %v671 = vmul.f32 %v664, 0.0
    %v672 = vadd.f32 %v670, %v671
    %v673 = vpack.c.bf16 %v672, %v672
    %674 = vmatprep.subr.bf16.mxu0 %v523
    %675 = vmatpush1.bf16.msra.mxu0 %v522
    %676 = vmatprep.subr.bf16.mxu0 %v526
    %677 = vmatpush1.bf16.msra.mxu0 %v525
    %678 = vmatprep.subr.bf16.mxu0 %v529
    %679 = vmatpush1.bf16.msra.mxu0 %v528
    %680 = vmatprep.subr.bf16.mxu0 %v532
    %681 = vmatpush1.bf16.msra.mxu0 %v531
    %682 = vmatprep.subr.bf16.mxu0 %v535
    %683 = vmatpush1.bf16.msra.mxu0 %v534
    %684 = vmatprep.subr.bf16.mxu0 %v538
    %685 = vmatpush1.bf16.msra.mxu0 %v537
    %686 = vmatprep.subr.bf16.mxu0 %v541
    %687 = vmatpush1.bf16.msra.mxu0 %v540
    %688 = vmatprep.subr.bf16.mxu0 %v544
    %689 = vmatpush1.bf16.msra.mxu0 %v543
    %690 = vmatprep.subr.bf16.mxu0 0
    %691 = vmatpush1.bf16.msra.mxu0 0
    %692 = vmatprep.subr.bf16.mxu0 0
    %693 = vmatpush1.bf16.msra.mxu0 0
    %694 = vmatprep.subr.bf16.mxu0 0
    %695 = vmatpush1.bf16.msra.mxu0 0
    %696 = vmatprep.subr.bf16.mxu0 0
    %697 = vmatpush1.bf16.msra.mxu0 0
    %698 = vmatprep.subr.bf16.mxu0 0
    %699 = vmatpush1.bf16.msra.mxu0 0
    %700 = vmatprep.subr.bf16.mxu0 0
    %701 = vmatpush1.bf16.msra.mxu0 0
    %702 = vmatprep.subr.bf16.mxu0 0
    %703 = vmatpush1.bf16.msra.mxu0 0
    %704 = vmatprep.subr.bf16.mxu0 0
    %705 = vmatpush1.bf16.msra.mxu0 0
    %706 = vmatprep.mubr.bf16.mxu0 0
    %707 = vmatmul.mubr.bf16.gmra.mrb[0].mxu0 %v673
    %v708 = vpop.f32.mrb[0].mxu0
    %v709 = vadd.f32 0.0, %v708
    %v710 = vpop.f32.mrb[0].mxu0
    %v711 = vadd.f32 0.0, %v710
    %v712 = vpop.f32.mrb[0].mxu0
    %v713 = vpop.f32.mrb[0].mxu0
    %714 = vdwg.mxu0
    %715 = vmatprep.subr.bf16.mxu0 0
    %716 = vmatpush1.bf16.msra.mxu0 %v524
    %717 = vmatprep.subr.bf16.mxu0 0
    %718 = vmatpush1.bf16.msra.mxu0 %v527
    %719 = vmatprep.subr.bf16.mxu0 0
    %720 = vmatpush1.bf16.msra.mxu0 %v530
    %721 = vmatprep.subr.bf16.mxu0 0
    %722 = vmatpush1.bf16.msra.mxu0 %v533
    %723 = vmatprep.subr.bf16.mxu0 0
    %724 = vmatpush1.bf16.msra.mxu0 %v536
    %725 = vmatprep.subr.bf16.mxu0 0
    %726 = vmatpush1.bf16.msra.mxu0 %v539
    %727 = vmatprep.subr.bf16.mxu0 0
    %728 = vmatpush1.bf16.msra.mxu0 %v542
    %729 = vmatprep.subr.bf16.mxu0 0
    %730 = vmatpush1.bf16.msra.mxu0 %v545
    %731 = vmatprep.subr.bf16.mxu0 0
    %732 = vmatpush1.bf16.msra.mxu0 0
    %733 = vmatprep.subr.bf16.mxu0 0
    %734 = vmatpush1.bf16.msra.mxu0 0
    %735 = vmatprep.subr.bf16.mxu0 0
    %736 = vmatpush1.bf16.msra.mxu0 0
    %737 = vmatprep.subr.bf16.mxu0 0
    %738 = vmatpush1.bf16.msra.mxu0 0
    %739 = vmatprep.subr.bf16.mxu0 0
    %740 = vmatpush1.bf16.msra.mxu0 0
    %741 = vmatprep.subr.bf16.mxu0 0
    %742 = vmatpush1.bf16.msra.mxu0 0
    %743 = vmatprep.subr.bf16.mxu0 0
    %744 = vmatpush1.bf16.msra.mxu0 0
    %745 = vmatprep.subr.bf16.mxu0 0
    %746 = vmatpush1.bf16.msra.mxu0 0
    %747 = vmatprep.mubr.bf16.mxu0 0
    %748 = vmatmul.mubr.bf16.gmra.mrb[0].mxu0 %v673
    %v749 = vpop.f32.mrb[0].mxu0
    %v750 = vadd.f32 0.0, %v749
    %v751 = vpop.f32.mrb[0].mxu0
    %v752 = vpop.f32.mrb[0].mxu0
    %v753 = vpop.f32.mrb[0].mxu0
    %754 = vdwg.mxu0
    %v755 = vadd.f32 %v304, %v709
    %v756 = vxor.u32 %v755, 2147483648
    %v757 = vmul.f32 %v756, 1.442695
    %v758 = vpow.pop %v757
    %v759 = vadd.f32 %v758, 1.0
    %v760 = vrcp.pop %v759
    %v761 = vmul.f32 1.0, %v760
    %v762 = vadd.f32 %v306, %v711
    %v763 = vxor.u32 %v762, 2147483648
    %v764 = vmul.f32 %v763, 1.442695
    %v765 = vpow.pop %v764
    %v766 = vadd.f32 %v765, 1.0
    %v767 = vrcp.pop %v766
    %v768 = vmul.f32 1.0, %v767
    %v769 = vadd.f32 %v750, %v440
    %v770 = vmul.f32 %v761, %v769
    %v771 = vadd.f32 %v376, %v770
    %v772 = vtanh.pop %v771
    %v773 = vsub.f32 1.0, %v768
    %v774 = vmul.f32 %v773, %v772
    %v775 = vmul.f32 %v768, %v672
    %v776 = vadd.f32 %v774, %v775
    %v777 = vpack.c.bf16 %v776, %v776
    %778 = vmatprep.subr.bf16.mxu0 %v523
    %779 = vmatpush1.bf16.msra.mxu0 %v522
    %780 = vmatprep.subr.bf16.mxu0 %v526
    %781 = vmatpush1.bf16.msra.mxu0 %v525
    %782 = vmatprep.subr.bf16.mxu0 %v529
    %783 = vmatpush1.bf16.msra.mxu0 %v528
    %784 = vmatprep.subr.bf16.mxu0 %v532
    %785 = vmatpush1.bf16.msra.mxu0 %v531
    %786 = vmatprep.subr.bf16.mxu0 %v535
    %787 = vmatpush1.bf16.msra.mxu0 %v534
    %788 = vmatprep.subr.bf16.mxu0 %v538
    %789 = vmatpush1.bf16.msra.mxu0 %v537
    %790 = vmatprep.subr.bf16.mxu0 %v541
    %791 = vmatpush1.bf16.msra.mxu0 %v540
    %792 = vmatprep.subr.bf16.mxu0 %v544
    %793 = vmatpush1.bf16.msra.mxu0 %v543
    %794 = vmatprep.subr.bf16.mxu0 0
    %795 = vmatpush1.bf16.msra.mxu0 0
    %796 = vmatprep.subr.bf16.mxu0 0
    %797 = vmatpush1.bf16.msra.mxu0 0
    %798 = vmatprep.subr.bf16.mxu0 0
    %799 = vmatpush1.bf16.msra.mxu0 0
    %800 = vmatprep.subr.bf16.mxu0 0
    %801 = vmatpush1.bf16.msra.mxu0 0
    %802 = vmatprep.subr.bf16.mxu0 0
    %803 = vmatpush1.bf16.msra.mxu0 0
    %804 = vmatprep.subr.bf16.mxu0 0
    %805 = vmatpush1.bf16.msra.mxu0 0
    %806 = vmatprep.subr.bf16.mxu0 0
    %807 = vmatpush1.bf16.msra.mxu0 0
    %808 = vmatprep.subr.bf16.mxu0 0
    %809 = vmatpush1.bf16.msra.mxu0 0
    %810 = vmatprep.mubr.bf16.mxu0 0
    %811 = vmatmul.mubr.bf16.gmra.mrb[0].mxu0 %v777
    %v812 = vpop.f32.mrb[0].mxu0
    %v813 = vadd.f32 0.0, %v812
    %v814 = vpop.f32.mrb[0].mxu0
    %v815 = vadd.f32 0.0, %v814
    %v816 = vpop.f32.mrb[0].mxu0
    %v817 = vpop.f32.mrb[0].mxu0
    %818 = vdwg.mxu0
    %819 = vmatprep.subr.bf16.mxu0 0
    %820 = vmatpush1.bf16.msra.mxu0 %v524
    %821 = vmatprep.subr.bf16.mxu0 0
    %822 = vmatpush1.bf16.msra.mxu0 %v527
    %823 = vmatprep.subr.bf16.mxu0 0
    %824 = vmatpush1.bf16.msra.mxu0 %v530
    %825 = vmatprep.subr.bf16.mxu0 0
    %826 = vmatpush1.bf16.msra.mxu0 %v533
    %827 = vmatprep.subr.bf16.mxu0 0
    %828 = vmatpush1.bf16.msra.mxu0 %v536
    %829 = vmatprep.subr.bf16.mxu0 0
    %830 = vmatpush1.bf16.msra.mxu0 %v539
    %831 = vmatprep.subr.bf16.mxu0 0
    %832 = vmatpush1.bf16.msra.mxu0 %v542
    %833 = vmatprep.subr.bf16.mxu0 0
    %834 = vmatpush1.bf16.msra.mxu0 %v545
    %835 = vmatprep.subr.bf16.mxu0 0
    %836 = vmatpush1.bf16.msra.mxu0 0
    %837 = vmatprep.subr.bf16.mxu0 0
    %838 = vmatpush1.bf16.msra.mxu0 0
    %839 = vmatprep.subr.bf16.mxu0 0
    %840 = vmatpush1.bf16.msra.mxu0 0
    %841 = vmatprep.subr.bf16.mxu0 0
    %842 = vmatpush1.bf16.msra.mxu0 0
    %843 = vmatprep.subr.bf16.mxu0 0
    %844 = vmatpush1.bf16.msra.mxu0 0
    %845 = vmatprep.subr.bf16.mxu0 0
    %846 = vmatpush1.bf16.msra.mxu0 0
    %847 = vmatprep.subr.bf16.mxu0 0
    %848 = vmatpush1.bf16.msra.mxu0 0
    %849 = vmatprep.subr.bf16.mxu0 0
    %850 = vmatpush1.bf16.msra.mxu0 0
    %851 = vmatprep.mubr.bf16.mxu0 0
    %852 = vmatmul.mubr.bf16.gmra.mrb[0].mxu0 %v777
    %v853 = vpop.f32.mrb[0].mxu0
    %v854 = vadd.f32 0.0, %v853
    %v855 = vpop.f32.mrb[0].mxu0
    %v856 = vpop.f32.mrb[0].mxu0
    %v857 = vpop.f32.mrb[0].mxu0
    %858 = vdwg.mxu0
    %v859 = vadd.f32 %v310, %v813
    %v860 = vxor.u32 %v859, 2147483648
    %v861 = vmul.f32 %v860, 1.442695
    %v862 = vpow.pop %v861
    %v863 = vadd.f32 %v862, 1.0
    %v864 = vrcp.pop %v863
    %v865 = vmul.f32 1.0, %v864
    %v866 = vadd.f32 %v312, %v815
    %v867 = vxor.u32 %v866, 2147483648
    %v868 = vmul.f32 %v867, 1.442695
    %v869 = vpow.pop %v868
    %v870 = vadd.f32 %v869, 1.0
    %v871 = vrcp.pop %v870
    %v872 = vmul.f32 1.0, %v871
    %v873 = vadd.f32 %v854, %v440
    %v874 = vmul.f32 %v865, %v873
    %v875 = vadd.f32 %v381, %v874
    %v876 = vtanh.pop %v875
    %v877 = vsub.f32 1.0, %v872
    %v878 = vmul.f32 %v877, %v876
    %v879 = vmul.f32 %v872, %v776
    %v880 = vadd.f32 %v878, %v879
    %v881 = vpack.c.bf16 %v880, %v880
    %882 = vmatprep.subr.bf16.mxu0 %v523
    %883 = vmatpush1.bf16.msra.mxu0 %v522
    %884 = vmatprep.subr.bf16.mxu0 %v526
    %885 = vmatpush1.bf16.msra.mxu0 %v525
    %886 = vmatprep.subr.bf16.mxu0 %v529
    %887 = vmatpush1.bf16.msra.mxu0 %v528
    %888 = vmatprep.subr.bf16.mxu0 %v532
    %889 = vmatpush1.bf16.msra.mxu0 %v531
    %890 = vmatprep.subr.bf16.mxu0 %v535
    %891 = vmatpush1.bf16.msra.mxu0 %v534
    %892 = vmatprep.subr.bf16.mxu0 %v538
    %893 = vmatpush1.bf16.msra.mxu0 %v537
    %894 = vmatprep.subr.bf16.mxu0 %v541
    %895 = vmatpush1.bf16.msra.mxu0 %v540
    %896 = vmatprep.subr.bf16.mxu0 %v544
    %897 = vmatpush1.bf16.msra.mxu0 %v543
    %898 = vmatprep.subr.bf16.mxu0 0
    %899 = vmatpush1.bf16.msra.mxu0 0
    %900 = vmatprep.subr.bf16.mxu0 0
    %901 = vmatpush1.bf16.msra.mxu0 0
    %902 = vmatprep.subr.bf16.mxu0 0
    %903 = vmatpush1.bf16.msra.mxu0 0
    %904 = vmatprep.subr.bf16.mxu0 0
    %905 = vmatpush1.bf16.msra.mxu0 0
    %906 = vmatprep.subr.bf16.mxu0 0
    %907 = vmatpush1.bf16.msra.mxu0 0
    %908 = vmatprep.subr.bf16.mxu0 0
    %909 = vmatpush1.bf16.msra.mxu0 0
    %910 = vmatprep.subr.bf16.mxu0 0
    %911 = vmatpush1.bf16.msra.mxu0 0
    %912 = vmatprep.subr.bf16.mxu0 0
    %913 = vmatpush1.bf16.msra.mxu0 0
    %914 = vmatprep.mubr.bf16.mxu0 0
    %915 = vmatmul.mubr.bf16.gmra.mrb[0].mxu0 %v881
    %v916 = vpop.f32.mrb[0].mxu0
    %v917 = vadd.f32 0.0, %v916
    %v918 = vpop.f32.mrb[0].mxu0
    %v919 = vadd.f32 0.0, %v918
    %v920 = vpop.f32.mrb[0].mxu0
    %v921 = vpop.f32.mrb[0].mxu0
    %922 = vdwg.mxu0
    %923 = vmatprep.subr.bf16.mxu0 0
    %924 = vmatpush1.bf16.msra.mxu0 %v524
    %925 = vmatprep.subr.bf16.mxu0 0
    %926 = vmatpush1.bf16.msra.mxu0 %v527
    %927 = vmatprep.subr.bf16.mxu0 0
    %928 = vmatpush1.bf16.msra.mxu0 %v530
    %929 = vmatprep.subr.bf16.mxu0 0
    %930 = vmatpush1.bf16.msra.mxu0 %v533
    %931 = vmatprep.subr.bf16.mxu0 0
    %932 = vmatpush1.bf16.msra.mxu0 %v536
    %933 = vmatprep.subr.bf16.mxu0 0
    %934 = vmatpush1.bf16.msra.mxu0 %v539
    %935 = vmatprep.subr.bf16.mxu0 0
    %936 = vmatpush1.bf16.msra.mxu0 %v542
    %937 = vmatprep.subr.bf16.mxu0 0
    %938 = vmatpush1.bf16.msra.mxu0 %v545
    %939 = vmatprep.subr.bf16.mxu0 0
    %940 = vmatpush1.bf16.msra.mxu0 0
    %941 = vmatprep.subr.bf16.mxu0 0
    %942 = vmatpush1.bf16.msra.mxu0 0
    %943 = vmatprep.subr.bf16.mxu0 0
    %944 = vmatpush1.bf16.msra.mxu0 0
    %945 = vmatprep.subr.bf16.mxu0 0
    %946 = vmatpush1.bf16.msra.mxu0 0
    %947 = vmatprep.subr.bf16.mxu0 0
    %948 = vmatpush1.bf16.msra.mxu0 0
    %949 = vmatprep.subr.bf16.mxu0 0
    %950 = vmatpush1.bf16.msra.mxu0 0
    %951 = vmatprep.subr.bf16.mxu0 0
    %952 = vmatpush1.bf16.msra.mxu0 0
    %953 = vmatprep.subr.bf16.mxu0 0
    %954 = vmatpush1.bf16.msra.mxu0 0
    %955 = vmatprep.mubr.bf16.mxu0 0
    %956 = vmatmul.mubr.bf16.gmra.mrb[0].mxu0 %v881
    %v957 = vpop.f32.mrb[0].mxu0
    %v958 = vadd.f32 0.0, %v957
    %v959 = vpop.f32.mrb[0].mxu0
    %v960 = vpop.f32.mrb[0].mxu0
    %v961 = vpop.f32.mrb[0].mxu0
    %962 = vdwg.mxu0
    %v963 = vadd.f32 %v314, %v917
    %v964 = vxor.u32 %v963, 2147483648
    %v965 = vmul.f32 %v964, 1.442695
    %v966 = vpow.pop %v965
    %v967 = vadd.f32 %v966, 1.0
    %v968 = vrcp.pop %v967
    %v969 = vmul.f32 1.0, %v968
    %v970 = vadd.f32 %v316, %v919
    %v971 = vxor.u32 %v970, 2147483648
    %v972 = vmul.f32 %v971, 1.442695
    %v973 = vpow.pop %v972
    %v974 = vadd.f32 %v973, 1.0
    %v975 = vrcp.pop %v974
    %v976 = vmul.f32 1.0, %v975
    %v977 = vadd.f32 %v958, %v440
    %v978 = vmul.f32 %v969, %v977
    %v979 = vadd.f32 %v384, %v978
    %v980 = vtanh.pop %v979
    %v981 = vsub.f32 1.0, %v976
    %v982 = vmul.f32 %v981, %v980
    %v983 = vmul.f32 %v976, %v880
    %v984 = vadd.f32 %v982, %v983
    %v985 = vpack.c.bf16 %v984, %v984
    %986 = vmatprep.subr.bf16.mxu0 %v523
    %987 = vmatpush1.bf16.msra.mxu0 %v522
    %988 = vmatprep.subr.bf16.mxu0 %v526
    %989 = vmatpush1.bf16.msra.mxu0 %v525
    %990 = vmatprep.subr.bf16.mxu0 %v529
    %991 = vmatpush1.bf16.msra.mxu0 %v528
    %992 = vmatprep.subr.bf16.mxu0 %v532
    %993 = vmatpush1.bf16.msra.mxu0 %v531
    %994 = vmatprep.subr.bf16.mxu0 %v535
    %995 = vmatpush1.bf16.msra.mxu0 %v534
    %996 = vmatprep.subr.bf16.mxu0 %v538
    %997 = vmatpush1.bf16.msra.mxu0 %v537
    %998 = vmatprep.subr.bf16.mxu0 %v541
    %999 = vmatpush1.bf16.msra.mxu0 %v540
    %1000 = vmatprep.subr.bf16.mxu0 %v544
    %1001 = vmatpush1.bf16.msra.mxu0 %v543
    %1002 = vmatprep.subr.bf16.mxu0 0
    %1003 = vmatpush1.bf16.msra.mxu0 0
    %1004 = vmatprep.subr.bf16.mxu0 0
    %1005 = vmatpush1.bf16.msra.mxu0 0
    %1006 = vmatprep.subr.bf16.mxu0 0
    %1007 = vmatpush1.bf16.msra.mxu0 0
    %1008 = vmatprep.subr.bf16.mxu0 0
    %1009 = vmatpush1.bf16.msra.mxu0 0
    %1010 = vmatprep.subr.bf16.mxu0 0
    %1011 = vmatpush1.bf16.msra.mxu0 0
    %1012 = vmatprep.subr.bf16.mxu0 0
    %1013 = vmatpush1.bf16.msra.mxu0 0
    %1014 = vmatprep.subr.bf16.mxu0 0
    %1015 = vmatpush1.bf16.msra.mxu0 0
    %1016 = vmatprep.subr.bf16.mxu0 0
    %1017 = vmatpush1.bf16.msra.mxu0 0
    %1018 = vmatprep.mubr.bf16.mxu0 0
    %1019 = vmatmul.mubr.bf16.gmra.mrb[0].mxu0 %v985
    %v1020 = vpop.f32.mrb[0].mxu0
    %v1021 = vadd.f32 0.0, %v1020
    %v1022 = vpop.f32.mrb[0].mxu0
    %v1023 = vadd.f32 0.0, %v1022
    %v1024 = vpop.f32.mrb[0].mxu0
    %v1025 = vpop.f32.mrb[0].mxu0
    %1026 = vdwg.mxu0
    %1027 = vmatprep.subr.bf16.mxu0 0
    %1028 = vmatpush1.bf16.msra.mxu0 %v524
    %1029 = vmatprep.subr.bf16.mxu0 0
    %1030 = vmatpush1.bf16.msra.mxu0 %v527
    %1031 = vmatprep.subr.bf16.mxu0 0
    %1032 = vmatpush1.bf16.msra.mxu0 %v530
    %1033 = vmatprep.subr.bf16.mxu0 0
    %1034 = vmatpush1.bf16.msra.mxu0 %v533
    %1035 = vmatprep.subr.bf16.mxu0 0
    %1036 = vmatpush1.bf16.msra.mxu0 %v536
    %1037 = vmatprep.subr.bf16.mxu0 0
    %1038 = vmatpush1.bf16.msra.mxu0 %v539
    %1039 = vmatprep.subr.bf16.mxu0 0
    %1040 = vmatpush1.bf16.msra.mxu0 %v542
    %1041 = vmatprep.subr.bf16.mxu0 0
    %1042 = vmatpush1.bf16.msra.mxu0 %v545
    %1043 = vmatprep.subr.bf16.mxu0 0
    %1044 = vmatpush1.bf16.msra.mxu0 0
    %1045 = vmatprep.subr.bf16.mxu0 0
    %1046 = vmatpush1.bf16.msra.mxu0 0
    %1047 = vmatprep.subr.bf16.mxu0 0
    %1048 = vmatpush1.bf16.msra.mxu0 0
    %1049 = vmatprep.subr.bf16.mxu0 0
    %1050 = vmatpush1.bf16.msra.mxu0 0
    %1051 = vmatprep.subr.bf16.mxu0 0
    %1052 = vmatpush1.bf16.msra.mxu0 0
    %1053 = vmatprep.subr.bf16.mxu0 0
    %1054 = vmatpush1.bf16.msra.mxu0 0
    %1055 = vmatprep.subr.bf16.mxu0 0
    %1056 = vmatpush1.bf16.msra.mxu0 0
    %1057 = vmatprep.subr.bf16.mxu0 0
    %1058 = vmatpush1.bf16.msra.mxu0 0
    %1059 = vmatprep.mubr.bf16.mxu0 0
    %1060 = vmatmul.mubr.bf16.gmra.mrb[0].mxu0 %v985
    %v1061 = vpop.f32.mrb[0].mxu0
    %v1062 = vadd.f32 0.0, %v1061
    %v1063 = vpop.f32.mrb[0].mxu0
    %v1064 = vpop.f32.mrb[0].mxu0
    %v1065 = vpop.f32.mrb[0].mxu0
    %1066 = vdwg.mxu0
    %v1067 = vadd.f32 %v320, %v1021
    %v1068 = vxor.u32 %v1067, 2147483648
    %v1069 = vmul.f32 %v1068, 1.442695
    %v1070 = vpow.pop %v1069
    %v1071 = vadd.f32 %v1070, 1.0
    %v1072 = vrcp.pop %v1071
    %v1073 = vmul.f32 1.0, %v1072
    %v1074 = vadd.f32 %v322, %v1023
    %v1075 = vxor.u32 %v1074, 2147483648
    %v1076 = vmul.f32 %v1075, 1.442695
    %v1077 = vpow.pop %v1076
    %v1078 = vadd.f32 %v1077, 1.0
    %v1079 = vrcp.pop %v1078
    %v1080 = vmul.f32 1.0, %v1079
    %v1081 = vadd.f32 %v1062, %v440
    %v1082 = vmul.f32 %v1073, %v1081
    %v1083 = vadd.f32 %v389, %v1082
    %v1084 = vtanh.pop %v1083
    %v1085 = vsub.f32 1.0, %v1080
    %v1086 = vmul.f32 %v1085, %v1084
    %v1087 = vmul.f32 %v1080, %v984
    %v1088 = vadd.f32 %v1086, %v1087
    %v1089 = vpack.c.bf16 %v1088, %v1088
    %1090 = vmatprep.subr.bf16.mxu0 %v523
    %1091 = vmatpush1.bf16.msra.mxu0 %v522
    %1092 = vmatprep.subr.bf16.mxu0 %v526
    %1093 = vmatpush1.bf16.msra.mxu0 %v525
    %1094 = vmatprep.subr.bf16.mxu0 %v529
    %1095 = vmatpush1.bf16.msra.mxu0 %v528
    %1096 = vmatprep.subr.bf16.mxu0 %v532
    %1097 = vmatpush1.bf16.msra.mxu0 %v531
    %1098 = vmatprep.subr.bf16.mxu0 %v535
    %1099 = vmatpush1.bf16.msra.mxu0 %v534
    %1100 = vmatprep.subr.bf16.mxu0 %v538
    %1101 = vmatpush1.bf16.msra.mxu0 %v537
    %1102 = vmatprep.subr.bf16.mxu0 %v541
    %1103 = vmatpush1.bf16.msra.mxu0 %v540
    %1104 = vmatprep.subr.bf16.mxu0 %v544
    %1105 = vmatpush1.bf16.msra.mxu0 %v543
    %1106 = vmatprep.subr.bf16.mxu0 0
    %1107 = vmatpush1.bf16.msra.mxu0 0
    %1108 = vmatprep.subr.bf16.mxu0 0
    %1109 = vmatpush1.bf16.msra.mxu0 0
    %1110 = vmatprep.subr.bf16.mxu0 0
    %1111 = vmatpush1.bf16.msra.mxu0 0
    %1112 = vmatprep.subr.bf16.mxu0 0
    %1113 = vmatpush1.bf16.msra.mxu0 0
    %1114 = vmatprep.subr.bf16.mxu0 0
    %1115 = vmatpush1.bf16.msra.mxu0 0
    %1116 = vmatprep.subr.bf16.mxu0 0
    %1117 = vmatpush1.bf16.msra.mxu0 0
    %1118 = vmatprep.subr.bf16.mxu0 0
    %1119 = vmatpush1.bf16.msra.mxu0 0
    %1120 = vmatprep.subr.bf16.mxu0 0
    %1121 = vmatpush1.bf16.msra.mxu0 0
    %1122 = vmatprep.mubr.bf16.mxu0 0
    %1123 = vmatmul.mubr.bf16.gmra.mrb[0].mxu0 %v1089
    %v1124 = vpop.f32.mrb[0].mxu0
    %v1125 = vadd.f32 0.0, %v1124
    %v1126 = vpop.f32.mrb[0].mxu0
    %v1127 = vadd.f32 0.0, %v1126
    %v1128 = vpop.f32.mrb[0].mxu0
    %v1129 = vpop.f32.mrb[0].mxu0
    %1130 = vdwg.mxu0
    %1131 = vmatprep.subr.bf16.mxu0 0
    %1132 = vmatpush1.bf16.msra.mxu0 %v524
    %1133 = vmatprep.subr.bf16.mxu0 0
    %1134 = vmatpush1.bf16.msra.mxu0 %v527
    %1135 = vmatprep.subr.bf16.mxu0 0
    %1136 = vmatpush1.bf16.msra.mxu0 %v530
    %1137 = vmatprep.subr.bf16.mxu0 0
    %1138 = vmatpush1.bf16.msra.mxu0 %v533
    %1139 = vmatprep.subr.bf16.mxu0 0
    %1140 = vmatpush1.bf16.msra.mxu0 %v536
    %1141 = vmatprep.subr.bf16.mxu0 0
    %1142 = vmatpush1.bf16.msra.mxu0 %v539
    %1143 = vmatprep.subr.bf16.mxu0 0
    %1144 = vmatpush1.bf16.msra.mxu0 %v542
    %1145 = vmatprep.subr.bf16.mxu0 0
    %1146 = vmatpush1.bf16.msra.mxu0 %v545
    %1147 = vmatprep.subr.bf16.mxu0 0
    %1148 = vmatpush1.bf16.msra.mxu0 0
    %1149 = vmatprep.subr.bf16.mxu0 0
    %1150 = vmatpush1.bf16.msra.mxu0 0
    %1151 = vmatprep.subr.bf16.mxu0 0
    %1152 = vmatpush1.bf16.msra.mxu0 0
    %1153 = vmatprep.subr.bf16.mxu0 0
    %1154 = vmatpush1.bf16.msra.mxu0 0
    %1155 = vmatprep.subr.bf16.mxu0 0
    %1156 = vmatpush1.bf16.msra.mxu0 0
    %1157 = vmatprep.subr.bf16.mxu0 0
    %1158 = vmatpush1.bf16.msra.mxu0 0
    %1159 = vmatprep.subr.bf16.mxu0 0
    %1160 = vmatpush1.bf16.msra.mxu0 0
    %1161 = vmatprep.subr.bf16.mxu0 0
    %1162 = vmatpush1.bf16.msra.mxu0 0
    %1163 = vmatprep.mubr.bf16.mxu0 0
    %1164 = vmatmul.mubr.bf16.gmra.mrb[0].mxu0 %v1089
    %v1165 = vpop.f32.mrb[0].mxu0
    %v1166 = vadd.f32 0.0, %v1165
    %v1167 = vpop.f32.mrb[0].mxu0
    %v1168 = vpop.f32.mrb[0].mxu0
    %v1169 = vpop.f32.mrb[0].mxu0
    %1170 = vdwg.mxu0
    %v1171 = vadd.f32 %v324, %v1125
    %v1172 = vxor.u32 %v1171, 2147483648
    %v1173 = vmul.f32 %v1172, 1.442695
    %v1174 = vpow.pop %v1173
    %v1175 = vadd.f32 %v1174, 1.0
    %v1176 = vrcp.pop %v1175
    %v1177 = vmul.f32 1.0, %v1176
    %v1178 = vadd.f32 %v326, %v1127
    %v1179 = vxor.u32 %v1178, 2147483648
    %v1180 = vmul.f32 %v1179, 1.442695
    %v1181 = vpow.pop %v1180
    %v1182 = vadd.f32 %v1181, 1.0
    %v1183 = vrcp.pop %v1182
    %v1184 = vmul.f32 1.0, %v1183
    %v1185 = vadd.f32 %v1166, %v440
    %v1186 = vmul.f32 %v1177, %v1185
    %v1187 = vadd.f32 %v392, %v1186
    %v1188 = vtanh.pop %v1187
    %v1189 = vsub.f32 1.0, %v1184
    %v1190 = vmul.f32 %v1189, %v1188
    %v1191 = vmul.f32 %v1184, %v1088
    %v1192 = vadd.f32 %v1190, %v1191
    %v1193 = vpack.c.bf16 %v1192, %v1192
    %1194 = vmatprep.subr.bf16.mxu0 %v523
    %1195 = vmatpush1.bf16.msra.mxu0 %v522
    %1196 = vmatprep.subr.bf16.mxu0 %v526
    %1197 = vmatpush1.bf16.msra.mxu0 %v525
    %1198 = vmatprep.subr.bf16.mxu0 %v529
    %1199 = vmatpush1.bf16.msra.mxu0 %v528
    %1200 = vmatprep.subr.bf16.mxu0 %v532
    %1201 = vmatpush1.bf16.msra.mxu0 %v531
    %1202 = vmatprep.subr.bf16.mxu0 %v535
    %1203 = vmatpush1.bf16.msra.mxu0 %v534
    %1204 = vmatprep.subr.bf16.mxu0 %v538
    %1205 = vmatpush1.bf16.msra.mxu0 %v537
    %1206 = vmatprep.subr.bf16.mxu0 %v541
    %1207 = vmatpush1.bf16.msra.mxu0 %v540
    %1208 = vmatprep.subr.bf16.mxu0 %v544
    %1209 = vmatpush1.bf16.msra.mxu0 %v543
    %1210 = vmatprep.subr.bf16.mxu0 0
    %1211 = vmatpush1.bf16.msra.mxu0 0
    %1212 = vmatprep.subr.bf16.mxu0 0
    %1213 = vmatpush1.bf16.msra.mxu0 0
    %1214 = vmatprep.subr.bf16.mxu0 0
    %1215 = vmatpush1.bf16.msra.mxu0 0
    %1216 = vmatprep.subr.bf16.mxu0 0
    %1217 = vmatpush1.bf16.msra.mxu0 0
    %1218 = vmatprep.subr.bf16.mxu0 0
    %1219 = vmatpush1.bf16.msra.mxu0 0
    %1220 = vmatprep.subr.bf16.mxu0 0
    %1221 = vmatpush1.bf16.msra.mxu0 0
    %1222 = vmatprep.subr.bf16.mxu0 0
    %1223 = vmatpush1.bf16.msra.mxu0 0
    %1224 = vmatprep.subr.bf16.mxu0 0
    %1225 = vmatpush1.bf16.msra.mxu0 0
    %1226 = vmatprep.mubr.bf16.mxu0 0
    %1227 = vmatmul.mubr.bf16.gmra.mrb[0].mxu0 %v1193
    %v1228 = vpop.f32.mrb[0].mxu0
    %v1229 = vadd.f32 0.0, %v1228
    %v1230 = vpop.f32.mrb[0].mxu0
    %v1231 = vadd.f32 0.0, %v1230
    %v1232 = vpop.f32.mrb[0].mxu0
    %v1233 = vpop.f32.mrb[0].mxu0
    %1234 = vdwg.mxu0
    %1235 = vmatprep.subr.bf16.mxu0 0
    %1236 = vmatpush1.bf16.msra.mxu0 %v524
    %1237 = vmatprep.subr.bf16.mxu0 0
    %1238 = vmatpush1.bf16.msra.mxu0 %v527
    %1239 = vmatprep.subr.bf16.mxu0 0
    %1240 = vmatpush1.bf16.msra.mxu0 %v530
    %1241 = vmatprep.subr.bf16.mxu0 0
    %1242 = vmatpush1.bf16.msra.mxu0 %v533
    %1243 = vmatprep.subr.bf16.mxu0 0
    %1244 = vmatpush1.bf16.msra.mxu0 %v536
    %1245 = vmatprep.subr.bf16.mxu0 0
    %1246 = vmatpush1.bf16.msra.mxu0 %v539
    %1247 = vmatprep.subr.bf16.mxu0 0
    %1248 = vmatpush1.bf16.msra.mxu0 %v542
    %1249 = vmatprep.subr.bf16.mxu0 0
    %1250 = vmatpush1.bf16.msra.mxu0 %v545
    %1251 = vmatprep.subr.bf16.mxu0 0
    %1252 = vmatpush1.bf16.msra.mxu0 0
    %1253 = vmatprep.subr.bf16.mxu0 0
    %1254 = vmatpush1.bf16.msra.mxu0 0
    %1255 = vmatprep.subr.bf16.mxu0 0
    %1256 = vmatpush1.bf16.msra.mxu0 0
    %1257 = vmatprep.subr.bf16.mxu0 0
    %1258 = vmatpush1.bf16.msra.mxu0 0
    %1259 = vmatprep.subr.bf16.mxu0 0
    %1260 = vmatpush1.bf16.msra.mxu0 0
    %1261 = vmatprep.subr.bf16.mxu0 0
    %1262 = vmatpush1.bf16.msra.mxu0 0
    %1263 = vmatprep.subr.bf16.mxu0 0
    %1264 = vmatpush1.bf16.msra.mxu0 0
    %1265 = vmatprep.subr.bf16.mxu0 0
    %1266 = vmatpush1.bf16.msra.mxu0 0
    %1267 = vmatprep.mubr.bf16.mxu0 0
    %1268 = vmatmul.mubr.bf16.gmra.mrb[0].mxu0 %v1193
    %v1269 = vpop.f32.mrb[0].mxu0
    %v1270 = vadd.f32 0.0, %v1269
    %v1271 = vpop.f32.mrb[0].mxu0
    %v1272 = vpop.f32.mrb[0].mxu0
    %v1273 = vpop.f32.mrb[0].mxu0
    %1274 = vdwg.mxu0
    %v1275 = vadd.f32 %v330, %v1229
    %v1276 = vxor.u32 %v1275, 2147483648
    %v1277 = vmul.f32 %v1276, 1.442695
    %v1278 = vpow.pop %v1277
    %v1279 = vadd.f32 %v1278, 1.0
    %v1280 = vrcp.pop %v1279
    %v1281 = vmul.f32 1.0, %v1280
    %v1282 = vadd.f32 %v332, %v1231
    %v1283 = vxor.u32 %v1282, 2147483648
    %v1284 = vmul.f32 %v1283, 1.442695
    %v1285 = vpow.pop %v1284
    %v1286 = vadd.f32 %v1285, 1.0
    %v1287 = vrcp.pop %v1286
    %v1288 = vmul.f32 1.0, %v1287
    %v1289 = vadd.f32 %v1270, %v440
    %v1290 = vmul.f32 %v1281, %v1289
    %v1291 = vadd.f32 %v397, %v1290
    %v1292 = vtanh.pop %v1291
    %v1293 = vsub.f32 1.0, %v1288
    %v1294 = vmul.f32 %v1293, %v1292
    %v1295 = vmul.f32 %v1288, %v1192
    %v1296 = vadd.f32 %v1294, %v1295
    %v1297 = vpack.c.bf16 %v1296, %v1296
    %1298 = vmatprep.subr.bf16.mxu0 %v523
    %1299 = vmatpush1.bf16.msra.mxu0 %v522
    %1300 = vmatprep.subr.bf16.mxu0 %v526
    %1301 = vmatpush1.bf16.msra.mxu0 %v525
    %1302 = vmatprep.subr.bf16.mxu0 %v529
    %1303 = vmatpush1.bf16.msra.mxu0 %v528
    %1304 = vmatprep.subr.bf16.mxu0 %v532
    %1305 = vmatpush1.bf16.msra.mxu0 %v531
    %1306 = vmatprep.subr.bf16.mxu0 %v535
    %1307 = vmatpush1.bf16.msra.mxu0 %v534
    %1308 = vmatprep.subr.bf16.mxu0 %v538
    %1309 = vmatpush1.bf16.msra.mxu0 %v537
    %1310 = vmatprep.subr.bf16.mxu0 %v541
    %1311 = vmatpush1.bf16.msra.mxu0 %v540
    %1312 = vmatprep.subr.bf16.mxu0 %v544
    %1313 = vmatpush1.bf16.msra.mxu0 %v543
    %1314 = vmatprep.subr.bf16.mxu0 0
    %1315 = vmatpush1.bf16.msra.mxu0 0
    %1316 = vmatprep.subr.bf16.mxu0 0
    %1317 = vmatpush1.bf16.msra.mxu0 0
    %1318 = vmatprep.subr.bf16.mxu0 0
    %1319 = vmatpush1.bf16.msra.mxu0 0
    %1320 = vmatprep.subr.bf16.mxu0 0
    %1321 = vmatpush1.bf16.msra.mxu0 0
    %1322 = vmatprep.subr.bf16.mxu0 0
    %1323 = vmatpush1.bf16.msra.mxu0 0
    %1324 = vmatprep.subr.bf16.mxu0 0
    %1325 = vmatpush1.bf16.msra.mxu0 0
    %1326 = vmatprep.subr.bf16.mxu0 0
    %1327 = vmatpush1.bf16.msra.mxu0 0
    %1328 = vmatprep.subr.bf16.mxu0 0
    %1329 = vmatpush1.bf16.msra.mxu0 0
    %1330 = vmatprep.mubr.bf16.mxu0 0
    %1331 = vmatmul.mubr.bf16.gmra.mrb[0].mxu0 %v1297
    %v1332 = vpop.f32.mrb[0].mxu0
    %v1333 = vadd.f32 0.0, %v1332
    %v1334 = vpop.f32.mrb[0].mxu0
    %v1335 = vadd.f32 0.0, %v1334
    %v1336 = vpop.f32.mrb[0].mxu0
    %v1337 = vpop.f32.mrb[0].mxu0
    %1338 = vdwg.mxu0
    %1339 = vmatprep.subr.bf16.mxu0 0
    %1340 = vmatpush1.bf16.msra.mxu0 %v524
    %1341 = vmatprep.subr.bf16.mxu0 0
    %1342 = vmatpush1.bf16.msra.mxu0 %v527
    %1343 = vmatprep.subr.bf16.mxu0 0
    %1344 = vmatpush1.bf16.msra.mxu0 %v530
    %1345 = vmatprep.subr.bf16.mxu0 0
    %1346 = vmatpush1.bf16.msra.mxu0 %v533
    %1347 = vmatprep.subr.bf16.mxu0 0
    %1348 = vmatpush1.bf16.msra.mxu0 %v536
    %1349 = vmatprep.subr.bf16.mxu0 0
    %1350 = vmatpush1.bf16.msra.mxu0 %v539
    %1351 = vmatprep.subr.bf16.mxu0 0
    %1352 = vmatpush1.bf16.msra.mxu0 %v542
    %1353 = vmatprep.subr.bf16.mxu0 0
    %1354 = vmatpush1.bf16.msra.mxu0 %v545
    %1355 = vmatprep.subr.bf16.mxu0 0
    %1356 = vmatpush1.bf16.msra.mxu0 0
    %1357 = vmatprep.subr.bf16.mxu0 0
    %1358 = vmatpush1.bf16.msra.mxu0 0
    %1359 = vmatprep.subr.bf16.mxu0 0
    %1360 = vmatpush1.bf16.msra.mxu0 0
    %1361 = vmatprep.subr.bf16.mxu0 0
    %1362 = vmatpush1.bf16.msra.mxu0 0
    %1363 = vmatprep.subr.bf16.mxu0 0
    %1364 = vmatpush1.bf16.msra.mxu0 0
    %1365 = vmatprep.subr.bf16.mxu0 0
    %1366 = vmatpush1.bf16.msra.mxu0 0
    %1367 = vmatprep.subr.bf16.mxu0 0
    %1368 = vmatpush1.bf16.msra.mxu0 0
    %1369 = vmatprep.subr.bf16.mxu0 0
    %1370 = vmatpush1.bf16.msra.mxu0 0
    %1371 = vmatprep.mubr.bf16.mxu0 0
    %1372 = vmatmul.mubr.bf16.gmra.mrb[0].mxu0 %v1297
    %v1373 = vpop.f32.mrb[0].mxu0
    %v1374 = vadd.f32 0.0, %v1373
    %v1375 = vpop.f32.mrb[0].mxu0
    %v1376 = vpop.f32.mrb[0].mxu0
    %v1377 = vpop.f32.mrb[0].mxu0
    %1378 = vdwg.mxu0
    %v1379 = vadd.f32 %v334, %v1333
    %v1380 = vxor.u32 %v1379, 2147483648
    %v1381 = vmul.f32 %v1380, 1.442695
    %v1382 = vpow.pop %v1381
    %v1383 = vadd.f32 %v1382, 1.0
    %v1384 = vrcp.pop %v1383
    %v1385 = vmul.f32 1.0, %v1384
    %v1386 = vadd.f32 %v336, %v1335
    %v1387 = vxor.u32 %v1386, 2147483648
    %v1388 = vmul.f32 %v1387, 1.442695
    %v1389 = vpow.pop %v1388
    %v1390 = vadd.f32 %v1389, 1.0
    %v1391 = vrcp.pop %v1390
    %v1392 = vmul.f32 1.0, %v1391
    %v1393 = vadd.f32 %v1374, %v440
    %v1394 = vmul.f32 %v1385, %v1393
    %v1395 = vadd.f32 %v400, %v1394
    %v1396 = vtanh.pop %v1395
    %v1397 = vsub.f32 1.0, %v1392
    %v1398 = vmul.f32 %v1397, %v1396
    %v1399 = vmul.f32 %v1392, %v1296
    %v1400 = vadd.f32 %v1398, %v1399
    %v1401 = vld [vmem:[#allocation6] sm:$0xff]
    %v1402 = vld [vmem:[#allocation6 + $0x8] sm:$0xf]
    %v1403 = vld [vmem:[#allocation6 + $0xc] sm:$0xff]
    %v1404 = vld [vmem:[#allocation6 + $0x14] sm:$0xf]
    %v1405 = vld [vmem:[#allocation6 + $0x18] sm:$0xff]
    %v1406 = vld [vmem:[#allocation6 + $0x20] sm:$0xf]
    %v1407 = vld [vmem:[#allocation6 + $0x24] sm:$0xff]
    %v1408 = vld [vmem:[#allocation6 + $0x2c] sm:$0xf]
    %v1409 = vld [vmem:[#allocation7] sm:$0x7]
    %v1411 = vlaneseq
    %v1412 = vshrl.u32 %v1411, 7
    %v1413 = vsub.s32 0, %v1412
    %v1414 = vrot.slane %v1409, %v1413
    %v1415 = vlaneseq
    %v1416 = vshrl.u32 %v1415, 7
    %v1417 = vsub.s32 1, %v1416
    %v1418 = vrot.slane %v1409, %v1417
    %v1419 = vlaneseq
    %v1420 = vshrl.u32 %v1419, 7
    %v1421 = vsub.s32 2, %v1420
    %v1422 = vrot.slane %v1409, %v1421
    %v1434 = vunpack.c.l.b16 %v1401
    %v1435 = vunpack.c.h.b16 %v1401
    %v1436 = vunpack.c.l.b16 %v1402
    %v1437 = vunpack.c.l.b16 %v1403
    %v1438 = vunpack.c.h.b16 %v1403
    %v1439 = vunpack.c.l.b16 %v1404
    %v1440 = vunpack.c.l.b16 %v1405
    %v1441 = vunpack.c.h.b16 %v1405
    %v1442 = vunpack.c.l.b16 %v1406
    %v1443 = vunpack.c.l.b16 %v1407
    %v1444 = vunpack.c.h.b16 %v1407
    %v1445 = vunpack.c.l.b16 %v1408
    %v1446 = vpack.c.b16 %v1437, %v1434
    %v1447 = vpack.c.b16 %v1438, %v1435
    %v1448 = vpack.c.b16 %v1439, %v1436
    %v1449 = vpack.c.b16 %v1443, %v1440
    %v1450 = vpack.c.b16 %v1444, %v1441
    %v1451 = vpack.c.b16 %v1445, %v1442
    %v1459 = vsel %vm252, %v174, 0
    %1461 = vmatprep.subr.bf16.mxu0 %v1447
    %1462 = vmatpush1.bf16.msra.mxu0 %v1446
    %1463 = vmatprep.subr.bf16.mxu0 %v1450
    %1464 = vmatpush1.bf16.msra.mxu0 %v1449
    %1465 = vmatprep.subr.bf16.mxu0 0
    %1466 = vmatpush1.bf16.msra.mxu0 0
    %1467 = vmatprep.subr.bf16.mxu0 0
    %1468 = vmatpush1.bf16.msra.mxu0 0
    %1469 = vmatprep.subr.bf16.mxu0 0
    %1470 = vmatpush1.bf16.msra.mxu0 0
    %1471 = vmatprep.subr.bf16.mxu0 0
    %1472 = vmatpush1.bf16.msra.mxu0 0
    %1473 = vmatprep.subr.bf16.mxu0 0
    %1474 = vmatpush1.bf16.msra.mxu0 0
    %1475 = vmatprep.subr.bf16.mxu0 0
    %1476 = vmatpush1.bf16.msra.mxu0 0
    %1477 = vmatprep.subr.bf16.mxu0 0
    %1478 = vmatpush1.bf16.msra.mxu0 0
    %1479 = vmatprep.subr.bf16.mxu0 0
    %1480 = vmatpush1.bf16.msra.mxu0 0
    %1481 = vmatprep.subr.bf16.mxu0 0
    %1482 = vmatpush1.bf16.msra.mxu0 0
    %1483 = vmatprep.subr.bf16.mxu0 0
    %1484 = vmatpush1.bf16.msra.mxu0 0
    %1485 = vmatprep.subr.bf16.mxu0 0
    %1486 = vmatpush1.bf16.msra.mxu0 0
    %1487 = vmatprep.subr.bf16.mxu0 0
    %1488 = vmatpush1.bf16.msra.mxu0 0
    %1489 = vmatprep.subr.bf16.mxu0 0
    %1490 = vmatpush1.bf16.msra.mxu0 0
    %1491 = vmatprep.subr.bf16.mxu0 0
    %1492 = vmatpush1.bf16.msra.mxu0 0
    %1493 = vmatprep.mubr.bf16.mxu0 0
    %1494 = vmatmul.mubr.bf16.gmra.mrb[0].mxu0 %v1459
    %v1495 = vpop.f32.mrb[0].mxu0
    %v1496 = vadd.f32 %v1414, %v1495
    %v1497 = vpop.f32.mrb[0].mxu0
    %v1498 = vadd.f32 %v1418, %v1497
    %v1499 = vpop.f32.mrb[0].mxu0
    %v1500 = vpop.f32.mrb[0].mxu0
    %1501 = vdwg.mxu0
    %1502 = vmatprep.subr.bf16.mxu0 0
    %1503 = vmatpush1.bf16.msra.mxu0 %v1448
    %1504 = vmatprep.subr.bf16.mxu0 0
    %1505 = vmatpush1.bf16.msra.mxu0 %v1451
    %1506 = vmatprep.subr.bf16.mxu0 0
    %1507 = vmatpush1.bf16.msra.mxu0 0
    %1508 = vmatprep.subr.bf16.mxu0 0
    %1509 = vmatpush1.bf16.msra.mxu0 0
    %1510 = vmatprep.subr.bf16.mxu0 0
    %1511 = vmatpush1.bf16.msra.mxu0 0
    %1512 = vmatprep.subr.bf16.mxu0 0
    %1513 = vmatpush1.bf16.msra.mxu0 0
    %1514 = vmatprep.subr.bf16.mxu0 0
    %1515 = vmatpush1.bf16.msra.mxu0 0
    %1516 = vmatprep.subr.bf16.mxu0 0
    %1517 = vmatpush1.bf16.msra.mxu0 0
    %1518 = vmatprep.subr.bf16.mxu0 0
    %1519 = vmatpush1.bf16.msra.mxu0 0
    %1520 = vmatprep.subr.bf16.mxu0 0
    %1521 = vmatpush1.bf16.msra.mxu0 0
    %1522 = vmatprep.subr.bf16.mxu0 0
    %1523 = vmatpush1.bf16.msra.mxu0 0
    %1524 = vmatprep.subr.bf16.mxu0 0
    %1525 = vmatpush1.bf16.msra.mxu0 0
    %1526 = vmatprep.subr.bf16.mxu0 0
    %1527 = vmatpush1.bf16.msra.mxu0 0
    %1528 = vmatprep.subr.bf16.mxu0 0
    %1529 = vmatpush1.bf16.msra.mxu0 0
    %1530 = vmatprep.subr.bf16.mxu0 0
    %1531 = vmatpush1.bf16.msra.mxu0 0
    %1532 = vmatprep.subr.bf16.mxu0 0
    %1533 = vmatpush1.bf16.msra.mxu0 0
    %1534 = vmatprep.mubr.bf16.mxu0 0
    %1535 = vmatmul.mubr.bf16.gmra.mrb[0].mxu0 %v1459
    %v1536 = vpop.f32.mrb[0].mxu0
    %v1537 = vadd.f32 %v1422, %v1536
    %v1538 = vpop.f32.mrb[0].mxu0
    %v1539 = vpop.f32.mrb[0].mxu0
    %v1540 = vpop.f32.mrb[0].mxu0
    %1541 = vdwg.mxu0
    %v1542 = vxor.u32 %v1496, 2147483648
    %v1543 = vmul.f32 %v1542, 1.442695
    %v1544 = vpow.pop %v1543
    %v1545 = vadd.f32 %v1544, 1.0
    %v1546 = vrcp.pop %v1545
    %v1547 = vmul.f32 1.0, %v1546
    %v1548 = vxor.u32 %v1498, 2147483648
    %v1549 = vmul.f32 %v1548, 1.442695
    %v1550 = vpow.pop %v1549
    %v1551 = vadd.f32 %v1550, 1.0
    %v1552 = vrcp.pop %v1551
    %v1553 = vmul.f32 1.0, %v1552
    %v1554 = vld [vmem:[#allocation9] sm:$0x1]
    %v1556 = vlaneseq
    %v1557 = vshrl.u32 %v1556, 7
    %v1558 = vsub.s32 0, %v1557
    %v1559 = vrot.slane %v1554, %v1558
    %v1561 = vmul.f32 %v1547, %v1559
    %v1562 = vadd.f32 %v1537, %v1561
    %v1563 = vtanh.pop %v1562
    %v1564 = vsub.f32 1.0, %v1553
    %v1565 = vmul.f32 %v1564, %v1563
    %v1566 = vpack.c.bf16 %v1400, %v1400
    %v1567 = vld [vmem:[%s8] sm:$0xff]
    %v1568 = vld [vmem:[%s8 + $0x8] sm:$0xff]
    %v1569 = vld [vmem:[%s8 + $0x10] sm:$0xff]
    %v1570 = vld [vmem:[%s8 + $0x18] sm:$0xff]
    %v1571 = vld [vmem:[%s8 + $0x20] sm:$0xff]
    %v1572 = vld [vmem:[%s8 + $0x28] sm:$0xff]
    %v1573 = vld [vmem:[%s8 + $0x30] sm:$0xff]
    %v1574 = vld [vmem:[%s8 + $0x38] sm:$0xff]
    %v1575 = vld [vmem:[%s8 + $0x40] sm:$0xff]
    %v1576 = vld [vmem:[%s8 + $0x48] sm:$0xff]
    %v1577 = vld [vmem:[%s8 + $0x50] sm:$0xff]
    %v1578 = vld [vmem:[%s8 + $0x58] sm:$0xff]
    %v1579 = vld [vmem:[%s8 + $0x60] sm:$0xff]
    %v1580 = vld [vmem:[%s8 + $0x68] sm:$0xff]
    %v1581 = vld [vmem:[%s8 + $0x70] sm:$0xff]
    %v1582 = vld [vmem:[%s8 + $0x78] sm:$0xff]
    %v1583 = vpack.c.bf16 %v1565, %v1565
    %v1584 = vld [vmem:[#allocation10] sm:$0xff]
    %v1585 = vld [vmem:[#allocation10 + $0x8] sm:$0xff]
    %v1586 = vld [vmem:[#allocation10 + $0x10] sm:$0xff]
    %v1587 = vld [vmem:[#allocation10 + $0x18] sm:$0xff]
    %v1588 = vld [vmem:[#allocation10 + $0x20] sm:$0xff]
    %v1589 = vld [vmem:[#allocation10 + $0x28] sm:$0xff]
    %v1590 = vld [vmem:[#allocation10 + $0x30] sm:$0xff]
    %v1591 = vld [vmem:[#allocation10 + $0x38] sm:$0xff]
    %v1592 = vld [vmem:[#allocation10 + $0x40] sm:$0xff]
    %v1593 = vld [vmem:[#allocation10 + $0x48] sm:$0xff]
    %v1594 = vld [vmem:[#allocation10 + $0x50] sm:$0xff]
    %v1595 = vld [vmem:[#allocation10 + $0x58] sm:$0xff]
    %v1596 = vld [vmem:[#allocation10 + $0x60] sm:$0xff]
    %v1597 = vld [vmem:[#allocation10 + $0x68] sm:$0xff]
    %v1598 = vld [vmem:[#allocation10 + $0x70] sm:$0xff]
    %v1599 = vld [vmem:[#allocation10 + $0x78] sm:$0xff]
    %v1616 = vunpack.c.l.b16 %v1584
    %v1617 = vunpack.c.h.b16 %v1584
    %v1618 = vunpack.c.l.b16 %v1585
    %v1619 = vunpack.c.h.b16 %v1585
    %v1620 = vunpack.c.l.b16 %v1586
    %v1621 = vunpack.c.h.b16 %v1586
    %v1622 = vunpack.c.l.b16 %v1587
    %v1623 = vunpack.c.h.b16 %v1587
    %v1624 = vunpack.c.l.b16 %v1588
    %v1625 = vunpack.c.h.b16 %v1588
    %v1626 = vunpack.c.l.b16 %v1589
    %v1627 = vunpack.c.h.b16 %v1589
    %v1628 = vunpack.c.l.b16 %v1590
    %v1629 = vunpack.c.h.b16 %v1590
    %v1630 = vunpack.c.l.b16 %v1591
    %v1631 = vunpack.c.h.b16 %v1591
    %v1632 = vunpack.c.l.b16 %v1592
    %v1633 = vunpack.c.h.b16 %v1592
    %v1634 = vunpack.c.l.b16 %v1593
    %v1635 = vunpack.c.h.b16 %v1593
    %v1636 = vunpack.c.l.b16 %v1594
    %v1637 = vunpack.c.h.b16 %v1594
    %v1638 = vunpack.c.l.b16 %v1595
    %v1639 = vunpack.c.h.b16 %v1595
    %v1640 = vunpack.c.l.b16 %v1596
    %v1641 = vunpack.c.h.b16 %v1596
    %v1642 = vunpack.c.l.b16 %v1597
    %v1643 = vunpack.c.h.b16 %v1597
    %v1644 = vunpack.c.l.b16 %v1598
    %v1645 = vunpack.c.h.b16 %v1598
    %v1646 = vunpack.c.l.b16 %v1599
    %v1647 = vunpack.c.h.b16 %v1599
    %v1648 = vpack.c.b16 %v1618, %v1616
    %v1649 = vpack.c.b16 %v1619, %v1617
    %v1650 = vpack.c.b16 %v1622, %v1620
    %v1651 = vpack.c.b16 %v1623, %v1621
    %v1652 = vpack.c.b16 %v1626, %v1624
    %v1653 = vpack.c.b16 %v1627, %v1625
    %v1654 = vpack.c.b16 %v1630, %v1628
    %v1655 = vpack.c.b16 %v1631, %v1629
    %v1656 = vpack.c.b16 %v1634, %v1632
    %v1657 = vpack.c.b16 %v1635, %v1633
    %v1658 = vpack.c.b16 %v1638, %v1636
    %v1659 = vpack.c.b16 %v1639, %v1637
    %v1660 = vpack.c.b16 %v1642, %v1640
    %v1661 = vpack.c.b16 %v1643, %v1641
    %v1662 = vpack.c.b16 %v1646, %v1644
    %v1663 = vpack.c.b16 %v1647, %v1645
    %1680 = vmatprep.subr.bf16.mxu0 %v1649
    %1681 = vmatpush1.bf16.msra.mxu0 %v1648
    %1682 = vmatprep.subr.bf16.mxu0 %v1651
    %1683 = vmatpush1.bf16.msra.mxu0 %v1650
    %1684 = vmatprep.subr.bf16.mxu0 %v1653
    %1685 = vmatpush1.bf16.msra.mxu0 %v1652
    %1686 = vmatprep.subr.bf16.mxu0 %v1655
    %1687 = vmatpush1.bf16.msra.mxu0 %v1654
    %1688 = vmatprep.subr.bf16.mxu0 %v1657
    %1689 = vmatpush1.bf16.msra.mxu0 %v1656
    %1690 = vmatprep.subr.bf16.mxu0 %v1659
    %1691 = vmatpush1.bf16.msra.mxu0 %v1658
    %1692 = vmatprep.subr.bf16.mxu0 %v1661
    %1693 = vmatpush1.bf16.msra.mxu0 %v1660
    %1694 = vmatprep.subr.bf16.mxu0 %v1663
    %1695 = vmatpush1.bf16.msra.mxu0 %v1662
    %1696 = vmatprep.subr.bf16.mxu0 0
    %1697 = vmatpush1.bf16.msra.mxu0 0
    %1698 = vmatprep.subr.bf16.mxu0 0
    %1699 = vmatpush1.bf16.msra.mxu0 0
    %1700 = vmatprep.subr.bf16.mxu0 0
    %1701 = vmatpush1.bf16.msra.mxu0 0
    %1702 = vmatprep.subr.bf16.mxu0 0
    %1703 = vmatpush1.bf16.msra.mxu0 0
    %1704 = vmatprep.subr.bf16.mxu0 0
    %1705 = vmatpush1.bf16.msra.mxu0 0
    %1706 = vmatprep.subr.bf16.mxu0 0
    %1707 = vmatpush1.bf16.msra.mxu0 0
    %1708 = vmatprep.subr.bf16.mxu0 0
    %1709 = vmatpush1.bf16.msra.mxu0 0
    %1710 = vmatprep.subr.bf16.mxu0 0
    %1711 = vmatpush1.bf16.msra.mxu0 0
    %1712 = vmatprep.mubr.bf16.mxu0 0
    %1713 = vmatmul.mubr.bf16.gmra.mrb[0].mxu0 %v1583
    %v1714 = vpop.f32.mrb[0].mxu0
    %v1715 = vadd.f32 0.0, %v1714
    %v1716 = vpop.f32.mrb[0].mxu0
    %v1717 = vadd.f32 0.0, %v1716
    %v1718 = vpop.f32.mrb[0].mxu0
    %v1719 = vpop.f32.mrb[0].mxu0
    %1720 = vdwg.mxu0
    %v1737 = vunpack.c.l.b16 %v1567
    %v1738 = vunpack.c.h.b16 %v1567
    %v1739 = vunpack.c.l.b16 %v1568
    %v1740 = vunpack.c.h.b16 %v1568
    %v1741 = vunpack.c.l.b16 %v1569
    %v1742 = vunpack.c.h.b16 %v1569
    %v1743 = vunpack.c.l.b16 %v1570
    %v1744 = vunpack.c.h.b16 %v1570
    %v1745 = vunpack.c.l.b16 %v1571
    %v1746 = vunpack.c.h.b16 %v1571
    %v1747 = vunpack.c.l.b16 %v1572
    %v1748 = vunpack.c.h.b16 %v1572
    %v1749 = vunpack.c.l.b16 %v1573
    %v1750 = vunpack.c.h.b16 %v1573
    %v1751 = vunpack.c.l.b16 %v1574
    %v1752 = vunpack.c.h.b16 %v1574
    %v1753 = vunpack.c.l.b16 %v1575
    %v1754 = vunpack.c.h.b16 %v1575
    %v1755 = vunpack.c.l.b16 %v1576
    %v1756 = vunpack.c.h.b16 %v1576
    %v1757 = vunpack.c.l.b16 %v1577
    %v1758 = vunpack.c.h.b16 %v1577
    %v1759 = vunpack.c.l.b16 %v1578
    %v1760 = vunpack.c.h.b16 %v1578
    %v1761 = vunpack.c.l.b16 %v1579
    %v1762 = vunpack.c.h.b16 %v1579
    %v1763 = vunpack.c.l.b16 %v1580
    %v1764 = vunpack.c.h.b16 %v1580
    %v1765 = vunpack.c.l.b16 %v1581
    %v1766 = vunpack.c.h.b16 %v1581
    %v1767 = vunpack.c.l.b16 %v1582
    %v1768 = vunpack.c.h.b16 %v1582
    %v1769 = vpack.c.b16 %v1739, %v1737
    %v1770 = vpack.c.b16 %v1740, %v1738
    %v1771 = vpack.c.b16 %v1743, %v1741
    %v1772 = vpack.c.b16 %v1744, %v1742
    %v1773 = vpack.c.b16 %v1747, %v1745
    %v1774 = vpack.c.b16 %v1748, %v1746
    %v1775 = vpack.c.b16 %v1751, %v1749
    %v1776 = vpack.c.b16 %v1752, %v1750
    %v1777 = vpack.c.b16 %v1755, %v1753
    %v1778 = vpack.c.b16 %v1756, %v1754
    %v1779 = vpack.c.b16 %v1759, %v1757
    %v1780 = vpack.c.b16 %v1760, %v1758
    %v1781 = vpack.c.b16 %v1763, %v1761
    %v1782 = vpack.c.b16 %v1764, %v1762
    %v1783 = vpack.c.b16 %v1767, %v1765
    %v1784 = vpack.c.b16 %v1768, %v1766
    %1801 = vmatprep.subr.bf16.mxu0 %v1770
    %1802 = vmatpush1.bf16.msra.mxu0 %v1769
    %1803 = vmatprep.subr.bf16.mxu0 %v1772
    %1804 = vmatpush1.bf16.msra.mxu0 %v1771
    %1805 = vmatprep.subr.bf16.mxu0 %v1774
    %1806 = vmatpush1.bf16.msra.mxu0 %v1773
    %1807 = vmatprep.subr.bf16.mxu0 %v1776
    %1808 = vmatpush1.bf16.msra.mxu0 %v1775
    %1809 = vmatprep.subr.bf16.mxu0 %v1778
    %1810 = vmatpush1.bf16.msra.mxu0 %v1777
    %1811 = vmatprep.subr.bf16.mxu0 %v1780
    %1812 = vmatpush1.bf16.msra.mxu0 %v1779
    %1813 = vmatprep.subr.bf16.mxu0 %v1782
    %1814 = vmatpush1.bf16.msra.mxu0 %v1781
    %1815 = vmatprep.subr.bf16.mxu0 %v1784
    %1816 = vmatpush1.bf16.msra.mxu0 %v1783
    %1817 = vmatprep.subr.bf16.mxu0 0
    %1818 = vmatpush1.bf16.msra.mxu0 0
    %1819 = vmatprep.subr.bf16.mxu0 0
    %1820 = vmatpush1.bf16.msra.mxu0 0
    %1821 = vmatprep.subr.bf16.mxu0 0
    %1822 = vmatpush1.bf16.msra.mxu0 0
    %1823 = vmatprep.subr.bf16.mxu0 0
    %1824 = vmatpush1.bf16.msra.mxu0 0
    %1825 = vmatprep.subr.bf16.mxu0 0
    %1826 = vmatpush1.bf16.msra.mxu0 0
    %1827 = vmatprep.subr.bf16.mxu0 0
    %1828 = vmatpush1.bf16.msra.mxu0 0
    %1829 = vmatprep.subr.bf16.mxu0 0
    %1830 = vmatpush1.bf16.msra.mxu0 0
    %1831 = vmatprep.subr.bf16.mxu0 0
    %1832 = vmatpush1.bf16.msra.mxu0 0
    %1833 = vmatprep.mubr.bf16.mxu0 0
    %1834 = vmatmul.mubr.bf16.gmra.mrb[0].mxu0 %v1566
    %v1835 = vpop.f32.mrb[0].mxu0
    %v1836 = vadd.f32 %v1715, %v1835
    %v1837 = vpop.f32.mrb[0].mxu0
    %v1838 = vadd.f32 %v1717, %v1837
    %v1839 = vpop.f32.mrb[0].mxu0
    %v1840 = vpop.f32.mrb[0].mxu0
    %1841 = vdwg.mxu0
    %v1842 = vld [vmem:[%s10] sm:$0x3]
    %v1844 = vlaneseq
    %v1845 = vshrl.u32 %v1844, 7
    %v1846 = vsub.s32 0, %v1845
    %v1847 = vrot.slane %v1842, %v1846
    %v1848 = vlaneseq
    %v1849 = vshrl.u32 %v1848, 7
    %v1850 = vsub.s32 1, %v1849
    %v1851 = vrot.slane %v1842, %v1850
    %v1854 = vadd.f32 %v1836, %v1847
    %v1855 = vadd.f32 %v1838, %v1851
    %v1856 = vmax.f32 %v1854, 0.0
    %v1857 = vmax.f32 %v1855, 0.0
    %v1858 = vld [vmem:[%s15] sm:$0xff]
    %v1859 = vld [vmem:[%s15 + $0x8] sm:$0xff]
    %v1860 = vmul.f32 %v1856, %v1858
    %v1861 = vmul.f32 %v1857, %v1859
    %v1862 = vpack.c.bf16 %v1860, %v1860
    %v1863 = vpack.c.bf16 %v1861, %v1861
    %v1864 = vld [vmem:[#allocation12] sm:$0xf]
    %v1865 = vld [vmem:[#allocation12 + $0x4] sm:$0xf]
    %v1866 = vld [vmem:[#allocation12 + $0x8] sm:$0xf]
    %v1867 = vld [vmem:[#allocation12 + $0xc] sm:$0xf]
    %v1868 = vld [vmem:[#allocation12 + $0x10] sm:$0xf]
    %v1869 = vld [vmem:[#allocation12 + $0x14] sm:$0xf]
    %v1870 = vld [vmem:[#allocation12 + $0x18] sm:$0xf]
    %v1871 = vld [vmem:[#allocation12 + $0x1c] sm:$0xf]
    %v1872 = vld [vmem:[#allocation12 + $0x20] sm:$0xf]
    %v1873 = vld [vmem:[#allocation12 + $0x24] sm:$0xf]
    %v1874 = vld [vmem:[#allocation12 + $0x28] sm:$0xf]
    %v1875 = vld [vmem:[#allocation12 + $0x2c] sm:$0xf]
    %v1876 = vld [vmem:[#allocation12 + $0x30] sm:$0xf]
    %v1877 = vld [vmem:[#allocation12 + $0x34] sm:$0xf]
    %v1878 = vld [vmem:[#allocation12 + $0x38] sm:$0xf]
    %v1879 = vld [vmem:[#allocation12 + $0x3c] sm:$0xf]
    %v1880 = vld [vmem:[#allocation12 + $0x40] sm:$0xf]
    %v1881 = vld [vmem:[#allocation12 + $0x44] sm:$0xf]
    %v1882 = vld [vmem:[#allocation12 + $0x48] sm:$0xf]
    %v1883 = vld [vmem:[#allocation12 + $0x4c] sm:$0xf]
    %v1884 = vld [vmem:[#allocation12 + $0x50] sm:$0xf]
    %v1885 = vld [vmem:[#allocation12 + $0x54] sm:$0xf]
    %v1886 = vld [vmem:[#allocation12 + $0x58] sm:$0xf]
    %v1887 = vld [vmem:[#allocation12 + $0x5c] sm:$0xf]
    %v1888 = vld [vmem:[#allocation12 + $0x60] sm:$0xf]
    %v1889 = vld [vmem:[#allocation12 + $0x64] sm:$0xf]
    %v1890 = vld [vmem:[#allocation12 + $0x68] sm:$0xf]
    %v1891 = vld [vmem:[#allocation12 + $0x6c] sm:$0xf]
    %v1892 = vld [vmem:[#allocation12 + $0x70] sm:$0xf]
    %v1893 = vld [vmem:[#allocation12 + $0x74] sm:$0xf]
    %v1894 = vld [vmem:[#allocation12 + $0x78] sm:$0xf]
    %v1895 = vld [vmem:[#allocation12 + $0x7c] sm:$0xf]
    %v1896 = vld [vmem:[#allocation13] sm:$0x1]
    %v1898 = vlaneseq
    %v1899 = vshrl.u32 %v1898, 7
    %v1900 = vsub.s32 0, %v1899
    %v1901 = vrot.slane %v1896, %v1900
    %v1935 = vunpack.c.l.b16 %v1864
    %v1936 = vunpack.c.l.b16 %v1865
    %v1937 = vunpack.c.l.b16 %v1866
    %v1938 = vunpack.c.l.b16 %v1867
    %v1939 = vunpack.c.l.b16 %v1868
    %v1940 = vunpack.c.l.b16 %v1869
    %v1941 = vunpack.c.l.b16 %v1870
    %v1942 = vunpack.c.l.b16 %v1871
    %v1943 = vunpack.c.l.b16 %v1872
    %v1944 = vunpack.c.l.b16 %v1873
    %v1945 = vunpack.c.l.b16 %v1874
    %v1946 = vunpack.c.l.b16 %v1875
    %v1947 = vunpack.c.l.b16 %v1876
    %v1948 = vunpack.c.l.b16 %v1877
    %v1949 = vunpack.c.l.b16 %v1878
    %v1950 = vunpack.c.l.b16 %v1879
    %v1951 = vunpack.c.l.b16 %v1880
    %v1952 = vunpack.c.l.b16 %v1881
    %v1953 = vunpack.c.l.b16 %v1882
    %v1954 = vunpack.c.l.b16 %v1883
    %v1955 = vunpack.c.l.b16 %v1884
    %v1956 = vunpack.c.l.b16 %v1885
    %v1957 = vunpack.c.l.b16 %v1886
    %v1958 = vunpack.c.l.b16 %v1887
    %v1959 = vunpack.c.l.b16 %v1888
    %v1960 = vunpack.c.l.b16 %v1889
    %v1961 = vunpack.c.l.b16 %v1890
    %v1962 = vunpack.c.l.b16 %v1891
    %v1963 = vunpack.c.l.b16 %v1892
    %v1964 = vunpack.c.l.b16 %v1893
    %v1965 = vunpack.c.l.b16 %v1894
    %v1966 = vunpack.c.l.b16 %v1895
    %v1967 = vpack.c.b16 %v1936, %v1935
    %v1968 = vpack.c.b16 %v1938, %v1937
    %v1969 = vpack.c.b16 %v1940, %v1939
    %v1970 = vpack.c.b16 %v1942, %v1941
    %v1971 = vpack.c.b16 %v1944, %v1943
    %v1972 = vpack.c.b16 %v1946, %v1945
    %v1973 = vpack.c.b16 %v1948, %v1947
    %v1974 = vpack.c.b16 %v1950, %v1949
    %v1975 = vpack.c.b16 %v1952, %v1951
    %v1976 = vpack.c.b16 %v1954, %v1953
    %v1977 = vpack.c.b16 %v1956, %v1955
    %v1978 = vpack.c.b16 %v1958, %v1957
    %v1979 = vpack.c.b16 %v1960, %v1959
    %v1980 = vpack.c.b16 %v1962, %v1961
    %v1981 = vpack.c.b16 %v1964, %v1963
    %v1982 = vpack.c.b16 %v1966, %v1965
    %1999 = vmatprep.subr.bf16.mxu0 0
    %2000 = vmatpush1.bf16.msra.mxu0 %v1967
    %2001 = vmatprep.subr.bf16.mxu0 0
    %2002 = vmatpush1.bf16.msra.mxu0 %v1968
    %2003 = vmatprep.subr.bf16.mxu0 0
    %2004 = vmatpush1.bf16.msra.mxu0 %v1969
    %2005 = vmatprep.subr.bf16.mxu0 0
    %2006 = vmatpush1.bf16.msra.mxu0 %v1970
    %2007 = vmatprep.subr.bf16.mxu0 0
    %2008 = vmatpush1.bf16.msra.mxu0 %v1971
    %2009 = vmatprep.subr.bf16.mxu0 0
    %2010 = vmatpush1.bf16.msra.mxu0 %v1972
    %2011 = vmatprep.subr.bf16.mxu0 0
    %2012 = vmatpush1.bf16.msra.mxu0 %v1973
    %2013 = vmatprep.subr.bf16.mxu0 0
    %2014 = vmatpush1.bf16.msra.mxu0 %v1974
    %2015 = vmatprep.subr.bf16.mxu0 0
    %2016 = vmatpush1.bf16.msra.mxu0 %v1975
    %2017 = vmatprep.subr.bf16.mxu0 0
    %2018 = vmatpush1.bf16.msra.mxu0 %v1976
    %2019 = vmatprep.subr.bf16.mxu0 0
    %2020 = vmatpush1.bf16.msra.mxu0 %v1977
    %2021 = vmatprep.subr.bf16.mxu0 0
    %2022 = vmatpush1.bf16.msra.mxu0 %v1978
    %2023 = vmatprep.subr.bf16.mxu0 0
    %2024 = vmatpush1.bf16.msra.mxu0 %v1979
    %2025 = vmatprep.subr.bf16.mxu0 0
    %2026 = vmatpush1.bf16.msra.mxu0 %v1980
    %2027 = vmatprep.subr.bf16.mxu0 0
    %2028 = vmatpush1.bf16.msra.mxu0 %v1981
    %2029 = vmatprep.subr.bf16.mxu0 0
    %2030 = vmatpush1.bf16.msra.mxu0 %v1982
    %2031 = vmatprep.mubr.bf16.mxu0 %v1863
    %2032 = vmatmul.mubr.bf16.gmra.mrb[0].mxu0 %v1862
    %v2033 = vpop.f32.mrb[0].mxu0
    %v2034 = vadd.f32 %v1901, %v2033
    %v2035 = vpop.f32.mrb[0].mxu0
    %v2036 = vpop.f32.mrb[0].mxu0
    %v2037 = vpop.f32.mrb[0].mxu0
    %2038 = vdwg.mxu0
    %v2039 = vmax.f32 %v2034, 0.0
    %v2040 = vld [vmem:[%s16] sm:$0xff]
    %v2041 = vmul.f32 %v2039, %v2040
    %v2042 = vpack.c.bf16 %v2041, %v2041
    %v2043 = vld [vmem:[%s13] sm:$0xf]
    %v2044 = vld [vmem:[%s13 + $0x4] sm:$0xf]
    %v2045 = vld [vmem:[%s13 + $0x8] sm:$0xf]
    %v2046 = vld [vmem:[%s13 + $0xc] sm:$0xf]
    %v2047 = vld [vmem:[%s13 + $0x10] sm:$0xf]
    %v2048 = vld [vmem:[%s13 + $0x14] sm:$0xf]
    %v2049 = vld [vmem:[%s13 + $0x18] sm:$0xf]
    %v2050 = vld [vmem:[%s13 + $0x1c] sm:$0xf]
    %v2051 = vld [vmem:[%s13 + $0x20] sm:$0xf]
    %v2052 = vld [vmem:[%s13 + $0x24] sm:$0xf]
    %v2053 = vld [vmem:[%s13 + $0x28] sm:$0xf]
    %v2054 = vld [vmem:[%s13 + $0x2c] sm:$0xf]
    %v2055 = vld [vmem:[%s13 + $0x30] sm:$0xf]
    %v2056 = vld [vmem:[%s13 + $0x34] sm:$0xf]
    %v2057 = vld [vmem:[%s13 + $0x38] sm:$0xf]
    %v2058 = vld [vmem:[%s13 + $0x3c] sm:$0xf]
    %v2059 = vld [vmem:[#allocation15] sm:$0x1]
    %v2061 = vlaneseq
    %v2062 = vshrl.u32 %v2061, 7
    %v2063 = vsub.s32 0, %v2062
    %v2064 = vrot.slane %v2059, %v2063
    %v2082 = vunpack.c.l.b16 %v2043
    %v2083 = vunpack.c.l.b16 %v2044
    %v2084 = vunpack.c.l.b16 %v2045
    %v2085 = vunpack.c.l.b16 %v2046
    %v2086 = vunpack.c.l.b16 %v2047
    %v2087 = vunpack.c.l.b16 %v2048
    %v2088 = vunpack.c.l.b16 %v2049
    %v2089 = vunpack.c.l.b16 %v2050
    %v2090 = vunpack.c.l.b16 %v2051
    %v2091 = vunpack.c.l.b16 %v2052
    %v2092 = vunpack.c.l.b16 %v2053
    %v2093 = vunpack.c.l.b16 %v2054
    %v2094 = vunpack.c.l.b16 %v2055
    %v2095 = vunpack.c.l.b16 %v2056
    %v2096 = vunpack.c.l.b16 %v2057
    %v2097 = vunpack.c.l.b16 %v2058
    %v2098 = vpack.c.b16 %v2083, %v2082
    %v2099 = vpack.c.b16 %v2085, %v2084
    %v2100 = vpack.c.b16 %v2087, %v2086
    %v2101 = vpack.c.b16 %v2089, %v2088
    %v2102 = vpack.c.b16 %v2091, %v2090
    %v2103 = vpack.c.b16 %v2093, %v2092
    %v2104 = vpack.c.b16 %v2095, %v2094
    %v2105 = vpack.c.b16 %v2097, %v2096
    %2114 = vmatprep.subr.bf16.mxu0 0
    %2115 = vmatpush1.bf16.msra.mxu0 %v2098
    %2116 = vmatprep.subr.bf16.mxu0 0
    %2117 = vmatpush1.bf16.msra.mxu0 %v2099
    %2118 = vmatprep.subr.bf16.mxu0 0
    %2119 = vmatpush1.bf16.msra.mxu0 %v2100
    %2120 = vmatprep.subr.bf16.mxu0 0
    %2121 = vmatpush1.bf16.msra.mxu0 %v2101
    %2122 = vmatprep.subr.bf16.mxu0 0
    %2123 = vmatpush1.bf16.msra.mxu0 %v2102
    %2124 = vmatprep.subr.bf16.mxu0 0
    %2125 = vmatpush1.bf16.msra.mxu0 %v2103
    %2126 = vmatprep.subr.bf16.mxu0 0
    %2127 = vmatpush1.bf16.msra.mxu0 %v2104
    %2128 = vmatprep.subr.bf16.mxu0 0
    %2129 = vmatpush1.bf16.msra.mxu0 %v2105
    %2130 = vmatprep.subr.bf16.mxu0 0
    %2131 = vmatpush1.bf16.msra.mxu0 0
    %2132 = vmatprep.subr.bf16.mxu0 0
    %2133 = vmatpush1.bf16.msra.mxu0 0
    %2134 = vmatprep.subr.bf16.mxu0 0
    %2135 = vmatpush1.bf16.msra.mxu0 0
    %2136 = vmatprep.subr.bf16.mxu0 0
    %2137 = vmatpush1.bf16.msra.mxu0 0
    %2138 = vmatprep.subr.bf16.mxu0 0
    %2139 = vmatpush1.bf16.msra.mxu0 0
    %2140 = vmatprep.subr.bf16.mxu0 0
    %2141 = vmatpush1.bf16.msra.mxu0 0
    %2142 = vmatprep.subr.bf16.mxu0 0
    %2143 = vmatpush1.bf16.msra.mxu0 0
    %2144 = vmatprep.subr.bf16.mxu0 0
    %2145 = vmatpush1.bf16.msra.mxu0 0
    %2146 = vmatprep.mubr.bf16.mxu0 0
    %2147 = vmatmul.mubr.bf16.gmra.mrb[0].mxu0 %v2042
    %v2148 = vpop.f32.mrb[0].mxu0
    %v2149 = vadd.f32 %v2064, %v2148
    %v2150 = vpop.f32.mrb[0].mxu0
    %v2151 = vpop.f32.mrb[0].mxu0
    %v2152 = vpop.f32.mrb[0].mxu0
    %2153 = vdwg.mxu0
    %2154 = vst [vmem:[%s17] sm:$0xff] %v2149
    // Predicated region
    $region106: #{e2ernn_forward.1} parent=1 // pred_check
      _
    $region107: #{e2ernn_forward.1} parent=1 // pred_check_branch
      %2156 = sbr.rel (0) target = $region109
    $region108: #{e2ernn_forward.1} parent=1 // pred_region
      _
    $region109: #{e2ernn_forward.1} parent=1 // pred_fallthru
      _
    // Predicated region
    $region110: #{e2ernn_forward.1} parent=1 // pred_check
      _
    $region111: #{e2ernn_forward.1} parent=1 // pred_check_branch
      %2158 = sbr.rel (0) target = $region113
    $region112: #{e2ernn_forward.1} parent=1 // pred_region
      _
    $region113: #{e2ernn_forward.1} parent=1 // pred_fallthru
      _
    %2159 = vsyncpa [#allocation3], 1
    %2160 = vsyncpa [#allocation5], 1
    %2161 = vsyncpa [#allocation8], 1
    %2162 = vsyncpa [#allocation11], 1
    %2163 = vsyncpa [#allocation14], 1

</llo_original>
